<compile_context>
chip_gen: v5e
topology: v5e:2x2
jax: 0.10.0
libtpu: 0.0.40
codegen_flags: <defaults>
</compile_context>

<pallas_src>
import jax
import jax.numpy as jnp
from jax import lax
from jax.experimental import pallas as pl
from jax.experimental.pallas import tpu as pltpu

_H = 32  # regressor hidden width (fixed by the module definition)


# ---------------------------------------------------------------------------
# kernel
# ---------------------------------------------------------------------------
def _make_kernel(S, F, Bt, max_shift):
    L1, L2 = S - 2, S - 4
    F2, F6 = 2 * F, 6 * F
    H = _H
    o_w2 = L2                    # WBIG column offsets (see _pack_params)
    o_wolt = L2 + F6
    o_wr1 = L2 + F6 + F2

    def kernel(yo_ref, yl_ref, cw_ref, wbig_ref, t_ref):
        cw = cw_ref[...]           # (R, 16)          small column parameters
        wbig = wbig_ref[...]       # (R, L2 + 11F)    packed matrices

        # ---- static slices of the packed weight slabs (hoisted once) ----
        wl_row = wbig[0:1, 0:L2]                       # (1, L2) linear_out_L weight
        w2b = wbig[0:F2, o_w2:o_w2 + F6]               # (2F, 6F) fused conv2 (block-diag)
        wolt = wbig[0:F2, o_wolt:o_wolt + F2]          # (2F, 2F) blockdiag(wout^T, wlab^T)
        wr1t_sim = wbig[0:H, o_wr1:o_wr1 + F]          # (H, F)
        wr1t_ol = wbig[0:H, o_wr1 + F:o_wr1 + 3 * F]   # (H, 2F)

        b2_col = cw[0:F2, 0:1]        # conv2 biases, both branches stacked
        lng_col = cw[0:F, 1:2]        # LayerNorm gamma
        lnb_col = cw[0:F, 2:3]        # LayerNorm beta
        bol_col = cw[0:F2, 3:4]       # [bout ; blab]
        br1_col = cw[0:H, 4:5]
        wr2_col = cw[0:H, 5:6]
        bL = cw[0:1, 6:7]             # linear_out_L bias (scalar)
        br2 = cw[1:2, 6:7]            # regressor final bias (scalar)
        w1o_k = [cw[0:F, 7 + k:8 + k] for k in range(3)]    # conv1 taps (out branch)
        w1l_k = [cw[F:F2, 7 + k:8 + k] for k in range(3)]   # conv1 taps (label branch)
        b1o_col = cw[0:F, 10:11]
        b1l_col = cw[F:F2, 10:11]

        sim_cols, hl_cols = [], []
        for b in range(Bt):                     # unrolled: Bt is small & static
            xob = yo_ref[b]                     # (1, S), sequence on lanes
            xlb = yl_ref[b]

            # conv1 (1->F, k=3) + ReLU as VPU tap-MACs, features on sublanes.
            h1o = b1o_col
            h1l = b1l_col
            for k in range(3):
                h1o = h1o + xob[:, k:k + L1] * w1o_k[k]
                h1l = h1l + xlb[:, k:k + L1] * w1l_k[k]
            h1 = jnp.concatenate([jnp.maximum(h1o, 0.0),
                                  jnp.maximum(h1l, 0.0)], axis=0)      # (2F, L1)

            # conv2 (F->F, k=3) + ReLU for BOTH branches: single im2col matmul.
            hcol = jnp.concatenate([h1[:, k:k + L2] for k in range(3)],
                                   axis=0)                              # (6F, L2)
            h2 = jnp.dot(w2b, hcol, preferred_element_type=jnp.float32) + b2_col
            h2 = jnp.maximum(h2, 0.0)                                   # (2F, L2)

            # similarity = sum_l h_out * h_label                       -> (F, 1)
            sim_cols.append(jnp.sum(h2[0:F] * h2[F:F2], axis=-1, keepdims=True))
            # linear_out_L applied to BOTH branches (mirrors the PyTorch forward)
            hl_cols.append(jnp.sum(h2 * wl_row, axis=-1, keepdims=True) + bL)  # (2F, 1)

        sim = sim_cols[0] if Bt == 1 else jnp.concatenate(sim_cols, axis=1)  # (F, Bt)
        hLa = hl_cols[0] if Bt == 1 else jnp.concatenate(hl_cols, axis=1)    # (2F, Bt)

        # LayerNorm over the feature axis (sublanes).
        mu = jnp.mean(sim, axis=0, keepdims=True)
        var = jnp.mean((sim - mu) ** 2, axis=0, keepdims=True)
        sim_n = (sim - mu) * lax.rsqrt(var + 1e-5) * lng_col + lnb_col       # (F, Bt)

        # linear_out / linear_label fused via a block-diagonal weight.
        hohl = jnp.dot(wolt, hLa, preferred_element_type=jnp.float32) + bol_col  # (2F, Bt)

        # Regressor; wr1 is pre-sliced so no (1, 3F) lane concat is needed.
        r = (jnp.dot(wr1t_sim, sim_n, preferred_element_type=jnp.float32)
             + jnp.dot(wr1t_ol, hohl, preferred_element_type=jnp.float32)
             + br1_col)
        r = jnp.maximum(r, 0.0)                                              # (H, Bt)
        t = jnp.sum(r * wr2_col, axis=0, keepdims=True) + br2                # (1, Bt)

        t = t * float(max_shift)
        t = jnp.clip(t, -float(max_shift), float(max_shift))
        t = jnp.round(t)
        # TODO(synk): PyTorch returns int64 (.long()); int32 here (JAX x64 disabled).
        t_ref[0] = t.astype(jnp.int32)

    return kernel


# ---------------------------------------------------------------------------
# weight packing: 20 parameter arrays -> 2 slabs (2 DMA streams)
# ---------------------------------------------------------------------------
def _pack_params(params, S):
    F = params["b1o"].shape[-1]
    L2 = S - 4
    F2 = 2 * F
    H = _H
    R = max(F2, H)

    # CW (R, 16): small "column" parameters, features on sublanes.
    cw = jnp.zeros((R, 16), jnp.float32)
    cw = cw.at[0:F2, 0].set(jnp.concatenate([params["b2o"][0], params["b2l"][0]]))
    cw = cw.at[0:F, 1].set(params["ln_g"][0])
    cw = cw.at[0:F, 2].set(params["ln_b"][0])
    cw = cw.at[0:F2, 3].set(jnp.concatenate([params["bout"][0], params["blab"][0]]))
    cw = cw.at[0:H, 4].set(params["br1"][0])
    cw = cw.at[0:H, 5].set(params["wr2"][:, 0])
    cw = cw.at[0, 6].set(params["bL"][0, 0])
    cw = cw.at[1, 6].set(params["br2"][0, 0])
    for k in range(3):
        cw = cw.at[0:F, 7 + k].set(params["w1o"][k])
        cw = cw.at[F:F2, 7 + k].set(params["w1l"][k])
    cw = cw.at[0:F, 10].set(params["b1o"][0])
    cw = cw.at[F:F2, 10].set(params["b1l"][0])

    # WBIG (R, L2 + 11F): packed matrices.
    #   [0:L2)        row 0: linear_out_L weight (applied to both branches)
    #   [L2:L2+6F)    fused conv2 weight, block-diagonal over branches
    #   [L2+6F:L2+8F) blockdiag(wout^T, wlab^T)
    #   [L2+8F:+3F)   wr1^T  (regressor first layer, cols = [sim | ho | hl])
    ncols = L2 + 11 * F
    wbig = jnp.zeros((R, ncols), jnp.float32)
    wbig = wbig.at[0, 0:L2].set(params["wL"][0])

    a_out = jnp.transpose(params["w2o"], (2, 0, 1))                # (fo, k, fi)
    a_out = jnp.pad(a_out, ((0, 0), (0, 0), (0, F))).reshape(F, 6 * F)
    a_lab = jnp.transpose(params["w2l"], (2, 0, 1))
    a_lab = jnp.pad(a_lab, ((0, 0), (0, 0), (F, 0))).reshape(F, 6 * F)
    wbig = wbig.at[0:F2, L2:L2 + 6 * F].set(jnp.concatenate([a_out, a_lab], axis=0))

    z = jnp.zeros((F, F), jnp.float32)
    wolt = jnp.concatenate(
        [jnp.concatenate([params["wout"].T, z], axis=1),
         jnp.concatenate([z, params["wlab"].T], axis=1)], axis=0)  # (2F, 2F)
    wbig = wbig.at[0:F2, L2 + 6 * F:L2 + 8 * F].set(wolt)

    wbig = wbig.at[0:H, L2 + 8 * F:L2 + 11 * F].set(params["wr1"].T)
    return cw, wbig


# ---------------------------------------------------------------------------
# wrapper
# ---------------------------------------------------------------------------
def metanet_forward(y_out, y_label, params, max_shift=50, batch_tile=None):
    """y_out, y_label: (B, 1, S) float32 (PyTorch NCL). Returns (B,) int32."""
    B, C, S = y_out.shape
    assert C == 1
    F = params["b1o"].shape[-1]

    if batch_tile is None:
        # keep >=2 parallel grid steps when possible (v7x has 2 TensorCores)
        batch_tile = B // 2 if (B >= 2 and B % 2 == 0) else B
    assert B % batch_tile == 0
    num_tiles = B // batch_tile

    cw, wbig = _pack_params(params, S)
    kernel = _make_kernel(S, F, batch_tile, max_shift)

    out = pl.pallas_call(
        kernel,
        grid=(num_tiles,),
        in_specs=[
            pl.BlockSpec((batch_tile, 1, S), lambda i: (i, 0, 0)),
            pl.BlockSpec((batch_tile, 1, S), lambda i: (i, 0, 0)),
            pl.BlockSpec(cw.shape, lambda i: (0, 0)),     # weight slabs: constant block
            pl.BlockSpec(wbig.shape, lambda i: (0, 0)),
        ],
        out_specs=pl.BlockSpec((1, 1, batch_tile), lambda i: (i, 0, 0)),
        out_shape=jax.ShapeDtypeStruct((num_tiles, 1, batch_tile), jnp.int32),
        compiler_params=pltpu.CompilerParams(
            dimension_semantics=("parallel",)),
    )(y_out, y_label, cw, wbig)
    return out.reshape(B)


# ---------------------------------------------------------------------------
# synthetic parameters + pure-JAX reference (mirrors the PyTorch forward)
# ---------------------------------------------------------------------------
def init_params(key, seq_len, feature_dim):
    """conv1 weight (K, F); conv2 weight (K, F_in, F_out); linears (in, out)."""
    F = feature_dim
    L2 = seq_len - 4
    keys = jax.random.split(key, 18)

    def nrm(k, shape, scale=0.1):
        return scale * jax.random.normal(k, shape, jnp.float32)

    return {
        "w1o": nrm(keys[0], (3, F)), "b1o": nrm(keys[1], (1, F)),
        "w2o": nrm(keys[2], (3, F, F)), "b2o": nrm(keys[3], (1, F)),
        "w1l": nrm(keys[4], (3, F)), "b1l": nrm(keys[5], (1, F)),
        "w2l": nrm(keys[6], (3, F, F)), "b2l": nrm(keys[7], (1, F)),
        "ln_g": jnp.ones((1, F), jnp.float32), "ln_b": jnp.zeros((1, F), jnp.float32),
        "wL": nrm(keys[8], (1, L2)), "bL": nrm(keys[9], (1, 1)),
        "wout": nrm(keys[10], (F, F)), "bout": nrm(keys[11], (1, F)),
        "wlab": nrm(keys[12], (F, F)), "blab": nrm(keys[13], (1, F)),
        "wr1": nrm(keys[14], (3 * F, _H)), "br1": nrm(keys[15], (1, _H)),
        "wr2": nrm(keys[16], (_H, 1)), "br2": nrm(keys[17], (1, 1)),
    }


def metanet_reference(y_out, y_label, params, max_shift=50):
    def conv_stack(x, w1, b1, w2, b2):
        B, _, S = x.shape
        F = b1.shape[-1]
        L1, L2 = S - 2, S - 4
        h1 = b1.reshape(1, F, 1) + sum(
            x[:, :, k:k + L1] * w1[k].reshape(1, F, 1) for k in range(3))
        h1 = jnp.maximum(h1, 0.0)
        h2 = b2.reshape(1, F, 1) + sum(
            jnp.einsum('bcl,cf->bfl', h1[:, :, k:k + L2], w2[k]) for k in range(3))
        return jnp.maximum(h2, 0.0)

    h_out = conv_stack(y_out, params["w1o"], params["b1o"], params["w2o"], params["b2o"])
    h_lab = conv_stack(y_label, params["w1l"], params["b1l"], params["w2l"], params["b2l"])

    sim = jnp.sum(h_out * h_lab, axis=-1)
    mu = jnp.mean(sim, -1, keepdims=True)
    var = jnp.mean((sim - mu) ** 2, -1, keepdims=True)
    sim = (sim - mu) / jnp.sqrt(var + 1e-5) * params["ln_g"] + params["ln_b"]

    ho = jnp.einsum('bfl,l->bf', h_out, params["wL"][0]) + params["bL"][0, 0]
    hl = jnp.einsum('bfl,l->bf', h_lab, params["wL"][0]) + params["bL"][0, 0]
    ho = ho @ params["wout"] + params["bout"]
    hl = hl @ params["wlab"] + params["blab"]

    comb = jnp.concatenate([sim, ho, hl], axis=1)
    r = jnp.maximum(comb @ params["wr1"] + params["br1"], 0.0)
    t = r @ params["wr2"] + params["br2"]
    t = jnp.clip(t * max_shift, -max_shift, max_shift)
    return jnp.round(t).astype(jnp.int32)[:, 0]


if __name__ == "__main__":
    B, S, F, MAX_SHIFT = 4, 132, 16, 50   # small shapes; seq_len-4 = 128 (lane friendly)
    key = jax.random.PRNGKey(0)
    kx, ky, kp = jax.random.split(key, 3)
    y_out = jax.random.normal(kx, (B, 1, S), jnp.float32)
    y_label = jax.random.normal(ky, (B, 1, S), jnp.float32)
    params = init_params(kp, S, F)

    t = metanet_forward(y_out, y_label, params, MAX_SHIFT)
    t = jax.block_until_ready(t)

    t_ref = metanet_reference(y_out, y_label, params, MAX_SHIFT)
    assert t.shape == (B,)
    # allow +/-1 for rounding-boundary differences between lowerings
    assert int(jnp.max(jnp.abs(t - t_ref))) <= 1, (t, t_ref)
    print("KERNEL_OK")
</pallas_src>

<mosaic_0001>
module attributes {stable_mosaic.version = 11 : i64} {
  func.func @kernel(%arg0: i32, %arg1: memref<2x1x132xf32, #tpu.memory_space<vmem>>, %arg2: memref<2x1x132xf32, #tpu.memory_space<vmem>>, %arg3: memref<32x16xf32, #tpu.memory_space<vmem>>, %arg4: memref<32x304xf32, #tpu.memory_space<vmem>>, %arg5: memref<1x1x2xi32, #tpu.memory_space<vmem>>) attributes {dimension_semantics = [#tpu.dimension_semantics<parallel>], iteration_bounds = array<i64: 2>, scalar_prefetch = 0 : i64, scratch_operands = 0 : i64, tpu.core_type = #tpu.core_type<tc>, window_params = [{transform_indices = @transform_0, window_bounds = array<i64: 2, 1, 132>}, {transform_indices = @transform_1, window_bounds = array<i64: 2, 1, 132>}, {pipeline_mode = #tpu.pipeline_mode<synchronous>, transform_indices = @transform_2, window_bounds = array<i64: 32, 16>}, {pipeline_mode = #tpu.pipeline_mode<synchronous>, transform_indices = @transform_3, window_bounds = array<i64: 32, 304>}, {transform_indices = @transform_4, window_bounds = array<i64: 1, 1, 2>}]} {
    %c0 = arith.constant 0 : index
    %c0_0 = arith.constant 0 : index
    %0 = vector.load %arg3[%c0, %c0_0] : memref<32x16xf32, #tpu.memory_space<vmem>>, vector<32x16xf32>
    %c0_1 = arith.constant 0 : index
    %c0_2 = arith.constant 0 : index
    %1 = vector.load %arg4[%c0_1, %c0_2] : memref<32x304xf32, #tpu.memory_space<vmem>>, vector<32x304xf32>
    %2 = vector.extract_strided_slice %1 {offsets = [0, 0], sizes = [1, 128], strides = [1, 1]} : vector<32x304xf32> to vector<1x128xf32>
    %3 = vector.extract_strided_slice %1 {offsets = [0, 128], sizes = [32, 96], strides = [1, 1]} : vector<32x304xf32> to vector<32x96xf32>
    %4 = vector.extract_strided_slice %1 {offsets = [0, 224], sizes = [32, 32], strides = [1, 1]} : vector<32x304xf32> to vector<32x32xf32>
    %5 = vector.extract_strided_slice %1 {offsets = [0, 256], sizes = [32, 16], strides = [1, 1]} : vector<32x304xf32> to vector<32x16xf32>
    %6 = vector.extract_strided_slice %1 {offsets = [0, 272], sizes = [32, 32], strides = [1, 1]} : vector<32x304xf32> to vector<32x32xf32>
    %7 = vector.extract_strided_slice %0 {offsets = [0, 0], sizes = [32, 1], strides = [1, 1]} : vector<32x16xf32> to vector<32x1xf32>
    %8 = vector.extract_strided_slice %0 {offsets = [0, 1], sizes = [16, 1], strides = [1, 1]} : vector<32x16xf32> to vector<16x1xf32>
    %9 = vector.extract_strided_slice %0 {offsets = [0, 2], sizes = [16, 1], strides = [1, 1]} : vector<32x16xf32> to vector<16x1xf32>
    %10 = vector.extract_strided_slice %0 {offsets = [0, 3], sizes = [32, 1], strides = [1, 1]} : vector<32x16xf32> to vector<32x1xf32>
    %11 = vector.extract_strided_slice %0 {offsets = [0, 4], sizes = [32, 1], strides = [1, 1]} : vector<32x16xf32> to vector<32x1xf32>
    %12 = vector.extract_strided_slice %0 {offsets = [0, 5], sizes = [32, 1], strides = [1, 1]} : vector<32x16xf32> to vector<32x1xf32>
    %13 = vector.extract_strided_slice %0 {offsets = [0, 6], sizes = [1, 1], strides = [1, 1]} : vector<32x16xf32> to vector<1x1xf32>
    %14 = vector.extract_strided_slice %0 {offsets = [1, 6], sizes = [1, 1], strides = [1, 1]} : vector<32x16xf32> to vector<1x1xf32>
    %15 = vector.extract_strided_slice %0 {offsets = [0, 7], sizes = [16, 1], strides = [1, 1]} : vector<32x16xf32> to vector<16x1xf32>
    %16 = vector.extract_strided_slice %0 {offsets = [0, 8], sizes = [16, 1], strides = [1, 1]} : vector<32x16xf32> to vector<16x1xf32>
    %17 = vector.extract_strided_slice %0 {offsets = [0, 9], sizes = [16, 1], strides = [1, 1]} : vector<32x16xf32> to vector<16x1xf32>
    %18 = vector.extract_strided_slice %0 {offsets = [16, 7], sizes = [16, 1], strides = [1, 1]} : vector<32x16xf32> to vector<16x1xf32>
    %19 = vector.extract_strided_slice %0 {offsets = [16, 8], sizes = [16, 1], strides = [1, 1]} : vector<32x16xf32> to vector<16x1xf32>
    %20 = vector.extract_strided_slice %0 {offsets = [16, 9], sizes = [16, 1], strides = [1, 1]} : vector<32x16xf32> to vector<16x1xf32>
    %21 = vector.extract_strided_slice %0 {offsets = [0, 10], sizes = [16, 1], strides = [1, 1]} : vector<32x16xf32> to vector<16x1xf32>
    %22 = vector.extract_strided_slice %0 {offsets = [16, 10], sizes = [16, 1], strides = [1, 1]} : vector<32x16xf32> to vector<16x1xf32>
    %c0_3 = arith.constant 0 : index
    %c0_4 = arith.constant 0 : index
    %c0_5 = arith.constant 0 : index
    %23 = vector.load %arg1[%c0_3, %c0_4, %c0_5] : memref<2x1x132xf32, #tpu.memory_space<vmem>>, vector<1x1x132xf32>
    %24 = vector.shape_cast %23 : vector<1x1x132xf32> to vector<1x132xf32>
    %c0_6 = arith.constant 0 : index
    %c0_7 = arith.constant 0 : index
    %c0_8 = arith.constant 0 : index
    %25 = vector.load %arg2[%c0_6, %c0_7, %c0_8] : memref<2x1x132xf32, #tpu.memory_space<vmem>>, vector<1x1x132xf32>
    %26 = vector.shape_cast %25 : vector<1x1x132xf32> to vector<1x132xf32>
    %27 = vector.extract_strided_slice %24 {offsets = [0, 0], sizes = [1, 130], strides = [1, 1]} : vector<1x132xf32> to vector<1x130xf32>
    %28 = vector.broadcast %27 : vector<1x130xf32> to vector<16x130xf32>
    %29 = vector.broadcast %15 : vector<16x1xf32> to vector<16x130xf32>
    %30 = arith.mulf %28, %29 : vector<16x130xf32>
    %31 = vector.broadcast %21 : vector<16x1xf32> to vector<16x130xf32>
    %32 = arith.addf %31, %30 : vector<16x130xf32>
    %33 = vector.extract_strided_slice %26 {offsets = [0, 0], sizes = [1, 130], strides = [1, 1]} : vector<1x132xf32> to vector<1x130xf32>
    %34 = vector.broadcast %33 : vector<1x130xf32> to vector<16x130xf32>
    %35 = vector.broadcast %18 : vector<16x1xf32> to vector<16x130xf32>
    %36 = arith.mulf %34, %35 : vector<16x130xf32>
    %37 = vector.broadcast %22 : vector<16x1xf32> to vector<16x130xf32>
    %38 = arith.addf %37, %36 : vector<16x130xf32>
    %39 = vector.extract_strided_slice %24 {offsets = [0, 1], sizes = [1, 130], strides = [1, 1]} : vector<1x132xf32> to vector<1x130xf32>
    %40 = vector.broadcast %39 : vector<1x130xf32> to vector<16x130xf32>
    %41 = vector.broadcast %16 : vector<16x1xf32> to vector<16x130xf32>
    %42 = arith.mulf %40, %41 : vector<16x130xf32>
    %43 = arith.addf %32, %42 : vector<16x130xf32>
    %44 = vector.extract_strided_slice %26 {offsets = [0, 1], sizes = [1, 130], strides = [1, 1]} : vector<1x132xf32> to vector<1x130xf32>
    %45 = vector.broadcast %44 : vector<1x130xf32> to vector<16x130xf32>
    %46 = vector.broadcast %19 : vector<16x1xf32> to vector<16x130xf32>
    %47 = arith.mulf %45, %46 : vector<16x130xf32>
    %48 = arith.addf %38, %47 : vector<16x130xf32>
    %49 = vector.extract_strided_slice %24 {offsets = [0, 2], sizes = [1, 130], strides = [1, 1]} : vector<1x132xf32> to vector<1x130xf32>
    %50 = vector.broadcast %49 : vector<1x130xf32> to vector<16x130xf32>
    %51 = vector.broadcast %17 : vector<16x1xf32> to vector<16x130xf32>
    %52 = arith.mulf %50, %51 : vector<16x130xf32>
    %53 = arith.addf %43, %52 : vector<16x130xf32>
    %54 = vector.extract_strided_slice %26 {offsets = [0, 2], sizes = [1, 130], strides = [1, 1]} : vector<1x132xf32> to vector<1x130xf32>
    %55 = vector.broadcast %54 : vector<1x130xf32> to vector<16x130xf32>
    %56 = vector.broadcast %20 : vector<16x1xf32> to vector<16x130xf32>
    %57 = arith.mulf %55, %56 : vector<16x130xf32>
    %58 = arith.addf %48, %57 : vector<16x130xf32>
    %cst = arith.constant 0.000000e+00 : f32
    %59 = vector.broadcast %cst : f32 to vector<16x130xf32>
    %60 = arith.maximumf %53, %59 : vector<16x130xf32>
    %cst_9 = arith.constant 0.000000e+00 : f32
    %61 = vector.broadcast %cst_9 : f32 to vector<16x130xf32>
    %62 = arith.maximumf %58, %61 : vector<16x130xf32>
    %63 = tpu.concatenate %60, %62 in 0 : vector<16x130xf32>, vector<16x130xf32> -> vector<32x130xf32>
    %64 = vector.extract_strided_slice %63 {offsets = [0, 0], sizes = [32, 128], strides = [1, 1]} : vector<32x130xf32> to vector<32x128xf32>
    %65 = vector.extract_strided_slice %63 {offsets = [0, 1], sizes = [32, 128], strides = [1, 1]} : vector<32x130xf32> to vector<32x128xf32>
    %66 = vector.extract_strided_slice %63 {offsets = [0, 2], sizes = [32, 128], strides = [1, 1]} : vector<32x130xf32> to vector<32x128xf32>
    %67 = tpu.concatenate %64, %65, %66 in 0 : vector<32x128xf32>, vector<32x128xf32>, vector<32x128xf32> -> vector<96x128xf32>
    %cst_10 = arith.constant dense<0.000000e+00> : vector<32x128xf32>
    %68 = tpu.matmul %3, %67, %cst_10 {dimension_numbers = #tpu.dot_dimension_numbers<[1], [0], [0], [1], [0, 0, 1, 1], [], []>} : vector<32x96xf32>, vector<96x128xf32>, vector<32x128xf32> -> vector<32x128xf32>
    %69 = vector.broadcast %7 : vector<32x1xf32> to vector<32x128xf32>
    %70 = arith.addf %68, %69 : vector<32x128xf32>
    %cst_11 = arith.constant 0.000000e+00 : f32
    %71 = vector.broadcast %cst_11 : f32 to vector<32x128xf32>
    %72 = arith.maximumf %70, %71 : vector<32x128xf32>
    %73 = vector.extract_strided_slice %72 {offsets = [0, 0], sizes = [16, 128], strides = [1, 1]} : vector<32x128xf32> to vector<16x128xf32>
    %74 = vector.extract_strided_slice %72 {offsets = [16, 0], sizes = [16, 128], strides = [1, 1]} : vector<32x128xf32> to vector<16x128xf32>
    %75 = arith.mulf %73, %74 : vector<16x128xf32>
    %cst_12 = arith.constant dense<0.000000e+00> : vector<16xf32>
    %76 = vector.multi_reduction <add>, %75, %cst_12 [1] : vector<16x128xf32> to vector<16xf32>
    %77 = vector.shape_cast %76 : vector<16xf32> to vector<16x1xf32>
    %78 = vector.broadcast %2 : vector<1x128xf32> to vector<32x128xf32>
    %79 = arith.mulf %72, %78 : vector<32x128xf32>
    %cst_13 = arith.constant dense<0.000000e+00> : vector<32xf32>
    %80 = vector.multi_reduction <add>, %79, %cst_13 [1] : vector<32x128xf32> to vector<32xf32>
    %81 = vector.shape_cast %80 : vector<32xf32> to vector<32x1xf32>
    %82 = vector.broadcast %13 : vector<1x1xf32> to vector<32x1xf32>
    %83 = arith.addf %81, %82 : vector<32x1xf32>
    %c1 = arith.constant 1 : index
    %c0_14 = arith.constant 0 : index
    %c0_15 = arith.constant 0 : index
    %84 = vector.load %arg1[%c1, %c0_14, %c0_15] : memref<2x1x132xf32, #tpu.memory_space<vmem>>, vector<1x1x132xf32>
    %85 = vector.shape_cast %84 : vector<1x1x132xf32> to vector<1x132xf32>
    %c1_16 = arith.constant 1 : index
    %c0_17 = arith.constant 0 : index
    %c0_18 = arith.constant 0 : index
    %86 = vector.load %arg2[%c1_16, %c0_17, %c0_18] : memref<2x1x132xf32, #tpu.memory_space<vmem>>, vector<1x1x132xf32>
    %87 = vector.shape_cast %86 : vector<1x1x132xf32> to vector<1x132xf32>
    %88 = vector.extract_strided_slice %85 {offsets = [0, 0], sizes = [1, 130], strides = [1, 1]} : vector<1x132xf32> to vector<1x130xf32>
    %89 = vector.broadcast %88 : vector<1x130xf32> to vector<16x130xf32>
    %90 = vector.broadcast %15 : vector<16x1xf32> to vector<16x130xf32>
    %91 = arith.mulf %89, %90 : vector<16x130xf32>
    %92 = vector.broadcast %21 : vector<16x1xf32> to vector<16x130xf32>
    %93 = arith.addf %92, %91 : vector<16x130xf32>
    %94 = vector.extract_strided_slice %87 {offsets = [0, 0], sizes = [1, 130], strides = [1, 1]} : vector<1x132xf32> to vector<1x130xf32>
    %95 = vector.broadcast %94 : vector<1x130xf32> to vector<16x130xf32>
    %96 = vector.broadcast %18 : vector<16x1xf32> to vector<16x130xf32>
    %97 = arith.mulf %95, %96 : vector<16x130xf32>
    %98 = vector.broadcast %22 : vector<16x1xf32> to vector<16x130xf32>
    %99 = arith.addf %98, %97 : vector<16x130xf32>
    %100 = vector.extract_strided_slice %85 {offsets = [0, 1], sizes = [1, 130], strides = [1, 1]} : vector<1x132xf32> to vector<1x130xf32>
    %101 = vector.broadcast %100 : vector<1x130xf32> to vector<16x130xf32>
    %102 = vector.broadcast %16 : vector<16x1xf32> to vector<16x130xf32>
    %103 = arith.mulf %101, %102 : vector<16x130xf32>
    %104 = arith.addf %93, %103 : vector<16x130xf32>
    %105 = vector.extract_strided_slice %87 {offsets = [0, 1], sizes = [1, 130], strides = [1, 1]} : vector<1x132xf32> to vector<1x130xf32>
    %106 = vector.broadcast %105 : vector<1x130xf32> to vector<16x130xf32>
    %107 = vector.broadcast %19 : vector<16x1xf32> to vector<16x130xf32>
    %108 = arith.mulf %106, %107 : vector<16x130xf32>
    %109 = arith.addf %99, %108 : vector<16x130xf32>
    %110 = vector.extract_strided_slice %85 {offsets = [0, 2], sizes = [1, 130], strides = [1, 1]} : vector<1x132xf32> to vector<1x130xf32>
    %111 = vector.broadcast %110 : vector<1x130xf32> to vector<16x130xf32>
    %112 = vector.broadcast %17 : vector<16x1xf32> to vector<16x130xf32>
    %113 = arith.mulf %111, %112 : vector<16x130xf32>
    %114 = arith.addf %104, %113 : vector<16x130xf32>
    %115 = vector.extract_strided_slice %87 {offsets = [0, 2], sizes = [1, 130], strides = [1, 1]} : vector<1x132xf32> to vector<1x130xf32>
    %116 = vector.broadcast %115 : vector<1x130xf32> to vector<16x130xf32>
    %117 = vector.broadcast %20 : vector<16x1xf32> to vector<16x130xf32>
    %118 = arith.mulf %116, %117 : vector<16x130xf32>
    %119 = arith.addf %109, %118 : vector<16x130xf32>
    %cst_19 = arith.constant 0.000000e+00 : f32
    %120 = vector.broadcast %cst_19 : f32 to vector<16x130xf32>
    %121 = arith.maximumf %114, %120 : vector<16x130xf32>
    %cst_20 = arith.constant 0.000000e+00 : f32
    %122 = vector.broadcast %cst_20 : f32 to vector<16x130xf32>
    %123 = arith.maximumf %119, %122 : vector<16x130xf32>
    %124 = tpu.concatenate %121, %123 in 0 : vector<16x130xf32>, vector<16x130xf32> -> vector<32x130xf32>
    %125 = vector.extract_strided_slice %124 {offsets = [0, 0], sizes = [32, 128], strides = [1, 1]} : vector<32x130xf32> to vector<32x128xf32>
    %126 = vector.extract_strided_slice %124 {offsets = [0, 1], sizes = [32, 128], strides = [1, 1]} : vector<32x130xf32> to vector<32x128xf32>
    %127 = vector.extract_strided_slice %124 {offsets = [0, 2], sizes = [32, 128], strides = [1, 1]} : vector<32x130xf32> to vector<32x128xf32>
    %128 = tpu.concatenate %125, %126, %127 in 0 : vector<32x128xf32>, vector<32x128xf32>, vector<32x128xf32> -> vector<96x128xf32>
    %cst_21 = arith.constant dense<0.000000e+00> : vector<32x128xf32>
    %129 = tpu.matmul %3, %128, %cst_21 {dimension_numbers = #tpu.dot_dimension_numbers<[1], [0], [0], [1], [0, 0, 1, 1], [], []>} : vector<32x96xf32>, vector<96x128xf32>, vector<32x128xf32> -> vector<32x128xf32>
    %130 = vector.broadcast %7 : vector<32x1xf32> to vector<32x128xf32>
    %131 = arith.addf %129, %130 : vector<32x128xf32>
    %cst_22 = arith.constant 0.000000e+00 : f32
    %132 = vector.broadcast %cst_22 : f32 to vector<32x128xf32>
    %133 = arith.maximumf %131, %132 : vector<32x128xf32>
    %134 = vector.extract_strided_slice %133 {offsets = [0, 0], sizes = [16, 128], strides = [1, 1]} : vector<32x128xf32> to vector<16x128xf32>
    %135 = vector.extract_strided_slice %133 {offsets = [16, 0], sizes = [16, 128], strides = [1, 1]} : vector<32x128xf32> to vector<16x128xf32>
    %136 = arith.mulf %134, %135 : vector<16x128xf32>
    %cst_23 = arith.constant dense<0.000000e+00> : vector<16xf32>
    %137 = vector.multi_reduction <add>, %136, %cst_23 [1] : vector<16x128xf32> to vector<16xf32>
    %138 = vector.shape_cast %137 : vector<16xf32> to vector<16x1xf32>
    %139 = vector.broadcast %2 : vector<1x128xf32> to vector<32x128xf32>
    %140 = arith.mulf %133, %139 : vector<32x128xf32>
    %cst_24 = arith.constant dense<0.000000e+00> : vector<32xf32>
    %141 = vector.multi_reduction <add>, %140, %cst_24 [1] : vector<32x128xf32> to vector<32xf32>
    %142 = vector.shape_cast %141 : vector<32xf32> to vector<32x1xf32>
    %143 = vector.broadcast %13 : vector<1x1xf32> to vector<32x1xf32>
    %144 = arith.addf %142, %143 : vector<32x1xf32>
    %145 = tpu.concatenate %77, %138 in 1 : vector<16x1xf32>, vector<16x1xf32> -> vector<16x2xf32>
    %146 = tpu.concatenate %83, %144 in 1 : vector<32x1xf32>, vector<32x1xf32> -> vector<32x2xf32>
    %cst_25 = arith.constant dense<0.000000e+00> : vector<2xf32>
    %147 = vector.multi_reduction <add>, %145, %cst_25 [0] : vector<16x2xf32> to vector<2xf32>
    %148 = vector.shape_cast %147 : vector<2xf32> to vector<1x2xf32>
    %cst_26 = arith.constant 1.600000e+01 : f32
    %149 = vector.broadcast %cst_26 : f32 to vector<1x2xf32>
    %150 = arith.divf %148, %149 : vector<1x2xf32>
    %151 = vector.broadcast %150 : vector<1x2xf32> to vector<16x2xf32>
    %152 = arith.subf %145, %151 : vector<16x2xf32>
    %153 = arith.mulf %152, %152 : vector<16x2xf32>
    %cst_27 = arith.constant dense<0.000000e+00> : vector<2xf32>
    %154 = vector.multi_reduction <add>, %153, %cst_27 [0] : vector<16x2xf32> to vector<2xf32>
    %155 = vector.shape_cast %154 : vector<2xf32> to vector<1x2xf32>
    %cst_28 = arith.constant 1.600000e+01 : f32
    %156 = vector.broadcast %cst_28 : f32 to vector<1x2xf32>
    %157 = arith.divf %155, %156 : vector<1x2xf32>
    %158 = vector.broadcast %150 : vector<1x2xf32> to vector<16x2xf32>
    %159 = arith.subf %145, %158 : vector<16x2xf32>
    %cst_29 = arith.constant 9.99999974E-6 : f32
    %160 = vector.broadcast %cst_29 : f32 to vector<1x2xf32>
    %161 = arith.addf %157, %160 : vector<1x2xf32>
    %162 = math.rsqrt %161 : vector<1x2xf32>
    %163 = vector.broadcast %162 : vector<1x2xf32> to vector<16x2xf32>
    %164 = arith.mulf %159, %163 : vector<16x2xf32>
    %165 = vector.broadcast %8 : vector<16x1xf32> to vector<16x2xf32>
    %166 = arith.mulf %164, %165 : vector<16x2xf32>
    %167 = vector.broadcast %9 : vector<16x1xf32> to vector<16x2xf32>
    %168 = arith.addf %166, %167 : vector<16x2xf32>
    %cst_30 = arith.constant dense<0.000000e+00> : vector<32x2xf32>
    %169 = tpu.matmul %4, %146, %cst_30 {dimension_numbers = #tpu.dot_dimension_numbers<[1], [0], [0], [1], [0, 0, 1, 1], [], []>} : vector<32x32xf32>, vector<32x2xf32>, vector<32x2xf32> -> vector<32x2xf32>
    %170 = vector.broadcast %10 : vector<32x1xf32> to vector<32x2xf32>
    %171 = arith.addf %169, %170 : vector<32x2xf32>
    %cst_31 = arith.constant dense<0.000000e+00> : vector<32x2xf32>
    %172 = tpu.matmul %5, %168, %cst_31 {dimension_numbers = #tpu.dot_dimension_numbers<[1], [0], [0], [1], [0, 0, 1, 1], [], []>} : vector<32x16xf32>, vector<16x2xf32>, vector<32x2xf32> -> vector<32x2xf32>
    %cst_32 = arith.constant dense<0.000000e+00> : vector<32x2xf32>
    %173 = tpu.matmul %6, %171, %cst_32 {dimension_numbers = #tpu.dot_dimension_numbers<[1], [0], [0], [1], [0, 0, 1, 1], [], []>} : vector<32x32xf32>, vector<32x2xf32>, vector<32x2xf32> -> vector<32x2xf32>
    %174 = arith.addf %172, %173 : vector<32x2xf32>
    %175 = vector.broadcast %11 : vector<32x1xf32> to vector<32x2xf32>
    %176 = arith.addf %174, %175 : vector<32x2xf32>
    %cst_33 = arith.constant 0.000000e+00 : f32
    %177 = vector.broadcast %cst_33 : f32 to vector<32x2xf32>
    %178 = arith.maximumf %176, %177 : vector<32x2xf32>
    %179 = vector.broadcast %12 : vector<32x1xf32> to vector<32x2xf32>
    %180 = arith.mulf %178, %179 : vector<32x2xf32>
    %cst_34 = arith.constant dense<0.000000e+00> : vector<2xf32>
    %181 = vector.multi_reduction <add>, %180, %cst_34 [0] : vector<32x2xf32> to vector<2xf32>
    %182 = vector.shape_cast %181 : vector<2xf32> to vector<1x2xf32>
    %183 = vector.broadcast %14 : vector<1x1xf32> to vector<1x2xf32>
    %184 = arith.addf %182, %183 : vector<1x2xf32>
    %cst_35 = arith.constant 5.000000e+01 : f32
    %185 = vector.broadcast %cst_35 : f32 to vector<1x2xf32>
    %186 = arith.mulf %184, %185 : vector<1x2xf32>
    %cst_36 = arith.constant -5.000000e+01 : f32
    %cst_37 = arith.constant 5.000000e+01 : f32
    %187 = vector.broadcast %cst_36 : f32 to vector<1x2xf32>
    %188 = arith.maximumf %187, %186 : vector<1x2xf32>
    %189 = vector.broadcast %cst_37 : f32 to vector<1x2xf32>
    %190 = arith.minimumf %189, %188 : vector<1x2xf32>
    %191 = math.roundeven %190 : vector<1x2xf32>
    %192 = arith.fptosi %191 : vector<1x2xf32> to vector<1x2xi32>
    %c0_38 = arith.constant 0 : index
    %c0_39 = arith.constant 0 : index
    %c0_40 = arith.constant 0 : index
    %193 = vector.load %arg5[%c0_38, %c0_39, %c0_40] : memref<1x1x2xi32, #tpu.memory_space<vmem>>, vector<1x1x2xi32>
    %194 = vector.shape_cast %193 : vector<1x1x2xi32> to vector<1x2xi32>
    %195 = vector.shape_cast %192 : vector<1x2xi32> to vector<1x1x2xi32>
    tpu.vector_store %arg5[%c0_38, %c0_39, %c0_40], %195 {strides = array<i32>} : memref<1x1x2xi32, #tpu.memory_space<vmem>>, vector<1x1x2xi32>,
    return
  }
  func.func @transform_0(%arg0: i32) -> (i32, i32, i32) {
    %c0_i32 = arith.constant 0 : i32
    %c0_i32_0 = arith.constant 0 : i32
    %c0_i32_1 = arith.constant 0 : i32
    return %arg0, %c0_i32, %c0_i32_0 : i32, i32, i32
  }
  func.func @transform_1(%arg0: i32) -> (i32, i32, i32) {
    %c0_i32 = arith.constant 0 : i32
    %c0_i32_0 = arith.constant 0 : i32
    %c0_i32_1 = arith.constant 0 : i32
    return %arg0, %c0_i32, %c0_i32_0 : i32, i32, i32
  }
  func.func @transform_2(%arg0: i32) -> (i32, i32) {
    %c0_i32 = arith.constant 0 : i32
    %c0_i32_0 = arith.constant 0 : i32
    %c0_i32_1 = arith.constant 0 : i32
    return %c0_i32, %c0_i32_0 : i32, i32
  }
  func.func @transform_3(%arg0: i32) -> (i32, i32) {
    %c0_i32 = arith.constant 0 : i32
    %c0_i32_0 = arith.constant 0 : i32
    %c0_i32_1 = arith.constant 0 : i32
    return %c0_i32, %c0_i32_0 : i32, i32
  }
  func.func @transform_4(%arg0: i32) -> (i32, i32, i32) {
    %c0_i32 = arith.constant 0 : i32
    %c0_i32_0 = arith.constant 0 : i32
    %c0_i32_1 = arith.constant 0 : i32
    return %arg0, %c0_i32, %c0_i32_0 : i32, i32, i32
  }
}

</mosaic_0001>

<llo_original>
// kernel: tpu_custom_call.1
$region0: #{tpu_custom_call.1}
  #allocation0 [shape = 'u32[]', space=smem, size = 0x4, offset = 0x4, fixed_abs, tag = 'smem constant byte address 0x4 - core index']
  #allocation1 [shape = 'u32[72,128]{1,0:T(1,128)}', space=vmem, size = 0x9000, scoped, tag = 'internal scratch']
  %s0 = inlined_call_operand.vmem [shape: f32[4,1,132], index: 0, kind: input, shape index: {}]
  %s1 = inlined_call_operand.vmem [shape: f32[4,1,132], index: 1, kind: input, shape index: {}]
  %s2 = inlined_call_operand.vmem [shape: f32[32,16], index: 2, kind: input, shape index: {}]
  %s3 = inlined_call_operand.hbm [shape: f32[32,304], index: 3, kind: input, shape index: {}]
  %s4 = inlined_call_operand.hbm [shape: s32[2,1,2], index: 4, kind: output, shape index: {}]
  %s5 = sld [smem:[#allocation0]]
  $region53: #{tpu_custom_call.1} parent=0
    _
  %s7 = ssub.s32 1, %s5
  %s8 = scalar_select 0, %s7, %s5
  $region1: #{tpu_custom_call.1} parent=0
    #allocation2 [shape = 'u8[49152]{0}', space=vmem, size = 0xc000, scoped, tag = 'input window, operand 3, single buffered']
    #allocation3 [shape = 's32[2]{0}', space=sflag, size = 0x8, scoped, tag = 'scoped memory for tpu_custom_call.1']
    #allocation4 [shape = 's32[2]{0}', space=sflag, size = 0x8, scoped, tag = 'scoped memory for tpu_custom_call.1']
    #allocation5 [shape = 'u8[1024]{0}', space=vmem, size = 0x400, scoped, tag = 'output window, operand 0']
    %9 = vsyncpa [#allocation3], 0
    %10 = vsyncpa [#allocation4], 0
    %s11 = scalar_lea.sflag [#allocation4], 1
    %12 = vsyncpa %s11, 0
    loop: start=0, step=1, limit=4
    $region2: #{tpu_custom_call.1} parent=1 // loop_pre_header
      _
    $region3: #{tpu_custom_call.1} parent=1 // loop_header
      %s14 = sphi 0, %s18
      %p15 = scmp.ge.s32.totalorder %s14, 4
      %s24 = sphi 0, %s26
      %s27 = sphi 0, %s24
      %s28 = sphi 0, %s27
      %s44 = sphi 0, %s28
      %s50 = sphi 0, %s52
      %s53 = sphi 0, %s50
      %s54 = sphi 0, %s53
      %s70 = sphi 0, %s54
      %s74 = sphi 0, %s74
      %s76 = sphi 0, %s74
      %s77 = sphi 0, %s76
      %s91 = sphi 0, %s77
      %s95 = sphi 0, %s95
      %s97 = sphi 0, %s95
      %s98 = sphi 0, %s97
      %s112 = sphi 0, %s98
      %s118 = sphi 0, %s120
      %s121 = sphi 0, %s118
      %s122 = sphi 0, %s121
      %s138 = sphi 0, %s122
    $region4: #{tpu_custom_call.1} parent=1 // loop_header_branch
      %17 = sbr.rel (%p15) target = $region8
    $region5: #{tpu_custom_call.1} parent=1 // loop_body
      %s19 = ssub.s32 %s14, 1
      %s20 = ssub.s32 %s14, 2
      %s21 = sadd.s32 %s14, 1
      %s22 = ssub.s32 %s14, %s21
      %p23 = scmp.eq.s32.totalorder %s22, 0
      %s25 = sadd.s32 %s24, 1
      %s26 = scalar_select %p23, %s24, %s25
      %p29 = pneg %p23
      %p30 = scmp.eq.s32.totalorder %s14, 1
      %p31 = por %p29, %p30
      %p32 = scmp.ne.s32.totalorder %s24, %s27
      %p33 = scmp.eq.s32.totalorder %s14, 0
      %p34 = por %p32, %p33
      %p35 = scmp.ne.s32.totalorder %s24, %s27
      %p36 = scmp.eq.s32.totalorder %s19, 1
      %p37 = por %p35, %p36
      %p38 = scmp.ne.s32.totalorder %s27, %s28
      %p39 = scmp.eq.s32.totalorder %s19, 0
      %p40 = por %p38, %p39
      %p41 = scmp.ne.s32.totalorder %s27, %s28
      %p42 = scmp.eq.s32.totalorder %s20, 1
      %p43 = por %p41, %p42
      %p45 = scmp.ne.s32.totalorder %s28, %s44
      %p46 = scmp.eq.s32.totalorder %s20, 0
      %p47 = por %p45, %p46
      %s48 = ssub.s32 %s14, %s21
      %p49 = scmp.eq.s32.totalorder %s48, 0
      %s51 = sadd.s32 %s50, 1
      %s52 = scalar_select %p49, %s50, %s51
      %p55 = pneg %p49
      %p56 = scmp.eq.s32.totalorder %s14, 1
      %p57 = por %p55, %p56
      %p58 = scmp.ne.s32.totalorder %s50, %s53
      %p59 = scmp.eq.s32.totalorder %s14, 0
      %p60 = por %p58, %p59
      %p61 = scmp.ne.s32.totalorder %s50, %s53
      %p62 = scmp.eq.s32.totalorder %s19, 1
      %p63 = por %p61, %p62
      %p64 = scmp.ne.s32.totalorder %s53, %s54
      %p65 = scmp.eq.s32.totalorder %s19, 0
      %p66 = por %p64, %p65
      %p67 = scmp.ne.s32.totalorder %s53, %s54
      %p68 = scmp.eq.s32.totalorder %s20, 1
      %p69 = por %p67, %p68
      %p71 = scmp.ne.s32.totalorder %s54, %s70
      %p72 = scmp.eq.s32.totalorder %s20, 0
      %p73 = por %p71, %p72
      %s75 = sadd.s32 %s74, 1
      %p78 = scmp.eq.s32.totalorder %s14, 1
      %p79 = scmp.ne.s32.totalorder %s74, %s76
      %p80 = scmp.eq.s32.totalorder %s14, 0
      %p81 = por %p79, %p80
      %p82 = scmp.ne.s32.totalorder %s74, %s76
      %p83 = scmp.eq.s32.totalorder %s19, 1
      %p84 = por %p82, %p83
      %p85 = scmp.ne.s32.totalorder %s76, %s77
      %p86 = scmp.eq.s32.totalorder %s19, 0
      %p87 = por %p85, %p86
      %p88 = scmp.ne.s32.totalorder %s76, %s77
      %p89 = scmp.eq.s32.totalorder %s20, 1
      %p90 = por %p88, %p89
      %p92 = scmp.ne.s32.totalorder %s77, %s91
      %p93 = scmp.eq.s32.totalorder %s20, 0
      %p94 = por %p92, %p93
      %s96 = sadd.s32 %s95, 1
      %p99 = scmp.eq.s32.totalorder %s14, 1
      %p100 = scmp.ne.s32.totalorder %s95, %s97
      %p101 = scmp.eq.s32.totalorder %s14, 0
      %p102 = por %p100, %p101
      %p103 = scmp.ne.s32.totalorder %s95, %s97
      %p104 = scmp.eq.s32.totalorder %s19, 1
      %p105 = por %p103, %p104
      %p106 = scmp.ne.s32.totalorder %s97, %s98
      %p107 = scmp.eq.s32.totalorder %s19, 0
      %p108 = por %p106, %p107
      %p109 = scmp.ne.s32.totalorder %s97, %s98
      %p110 = scmp.eq.s32.totalorder %s20, 1
      %p111 = por %p109, %p110
      %p113 = scmp.ne.s32.totalorder %s98, %s112
      %p114 = scmp.eq.s32.totalorder %s20, 0
      %p115 = por %p113, %p114
      %s116 = ssub.s32 %s14, %s21
      %p117 = scmp.eq.s32.totalorder %s116, 0
      %s119 = sadd.s32 %s118, 1
      %s120 = scalar_select %p117, %s118, %s119
      %p123 = pneg %p117
      %p124 = scmp.eq.s32.totalorder %s14, 1
      %p125 = por %p123, %p124
      %p126 = scmp.ne.s32.totalorder %s118, %s121
      %p127 = scmp.eq.s32.totalorder %s14, 0
      %p128 = por %p126, %p127
      %p129 = scmp.ne.s32.totalorder %s118, %s121
      %p130 = scmp.eq.s32.totalorder %s19, 1
      %p131 = por %p129, %p130
      %p132 = scmp.ne.s32.totalorder %s121, %s122
      %p133 = scmp.eq.s32.totalorder %s19, 0
      %p134 = por %p132, %p133
      %p135 = scmp.ne.s32.totalorder %s121, %s122
      %p136 = scmp.eq.s32.totalorder %s20, 1
      %p137 = por %p135, %p136
      %p139 = scmp.ne.s32.totalorder %s122, %s138
      %p140 = scmp.eq.s32.totalorder %s20, 0
      %p141 = por %p139, %p140
      %p142 = scmp.le.s32.totalorder 1, %s14
      %p143 = scmp.lt.s32.totalorder %s14, 3
      %p144 = pnand %p142, %p143
      %p145 = pneg %p144
      // Predicated region
      $region9: #{tpu_custom_call.1} parent=5 // pred_check
        _
      $region10: #{tpu_custom_call.1} parent=5 // pred_check_branch
        %147 = sbr.rel (%p144) target = $region12
      $region11: #{tpu_custom_call.1} parent=5 // pred_region
        %s148 = ssub.s32 %s14, 1
        // Predicated region
        $region13: #{tpu_custom_call.1} parent=11 // pred_check
          %p149 = pneg %p87
        $region14: #{tpu_custom_call.1} parent=11 // pred_check_branch
          %151 = sbr.rel (%p149) target = $region16
        $region15: #{tpu_custom_call.1} parent=11 // pred_region
          _
        $region16: #{tpu_custom_call.1} parent=11 // pred_fallthru
          _
        // Predicated region
        $region17: #{tpu_custom_call.1} parent=11 // pred_check
          %p152 = pneg %p108
        $region18: #{tpu_custom_call.1} parent=11 // pred_check_branch
          %154 = sbr.rel (%p152) target = $region20
        $region19: #{tpu_custom_call.1} parent=11 // pred_region
          %156 = vsyncadd [#allocation3], 0
          %s157 = sshll.u32 %s3, 4
          %s158 = int_to_ptr.hbm [resolvable:$true] %s157
          %s159 = sshll.u32 [#allocation2], 4
          %s160 = int_to_ptr.vmem [resolvable:$true] %s159
          %165 = dma.hbm_to_vmem [thread:$0]  %s158, 1536, %s160, [#allocation3], 384, 384, 24
        $region20: #{tpu_custom_call.1} parent=11 // pred_fallthru
          _
      $region12: #{tpu_custom_call.1} parent=5 // pred_fallthru
        _
      %p166 = scmp.lt.s32.totalorder %s14, 2
      // Predicated region
      $region21: #{tpu_custom_call.1} parent=5 // pred_check
        %p167 = pneg %p166
      $region22: #{tpu_custom_call.1} parent=5 // pred_check_branch
        %169 = sbr.rel (%p167) target = $region24
      $region23: #{tpu_custom_call.1} parent=5 // pred_region
        // Predicated region
        $region25: #{tpu_custom_call.1} parent=23 // pred_check
          %p170 = pneg %p34
        $region26: #{tpu_custom_call.1} parent=23 // pred_check_branch
          %172 = sbr.rel (%p170) target = $region28
        $region27: #{tpu_custom_call.1} parent=23 // pred_region
          %s173 = smul.u32 2, %s14
          %p174 = scmp.lt.s32.totalorder %s173, 3
          %s175 = scalar_select %p174, %s173, 3
          %s176 = smul.addr %s175, 2
          %s177 = scalar_lea.vmem %s0, %s176
          %s178 = smul.u32 2, %s14
        $region28: #{tpu_custom_call.1} parent=23 // pred_fallthru
          _
        // Predicated region
        $region29: #{tpu_custom_call.1} parent=23 // pred_check
          %p179 = pneg %p60
        $region30: #{tpu_custom_call.1} parent=23 // pred_check_branch
          %181 = sbr.rel (%p179) target = $region32
        $region31: #{tpu_custom_call.1} parent=23 // pred_region
          %s182 = smul.u32 2, %s14
          %p183 = scmp.lt.s32.totalorder %s182, 3
          %s184 = scalar_select %p183, %s182, 3
          %s185 = smul.addr %s184, 2
          %s186 = scalar_lea.vmem %s1, %s185
          %s187 = smul.u32 2, %s14
        $region32: #{tpu_custom_call.1} parent=23 // pred_fallthru
          _
      $region24: #{tpu_custom_call.1} parent=5 // pred_fallthru
        _
      %p188 = scmp.le.s32.totalorder 1, %s14
      %p189 = scmp.lt.s32.totalorder %s14, 3
      %p190 = pnand %p188, %p189
      %p191 = pneg %p190
      // Predicated region
      $region33: #{tpu_custom_call.1} parent=5 // pred_check
        _
      $region34: #{tpu_custom_call.1} parent=5 // pred_check_branch
        %193 = sbr.rel (%p190) target = $region36
      $region35: #{tpu_custom_call.1} parent=5 // pred_region
        %s194 = ssub.s32 %s14, 1
        // Predicated region
        $region37: #{tpu_custom_call.1} parent=35 // pred_check
          %p195 = pneg %p108
        $region38: #{tpu_custom_call.1} parent=35 // pred_check_branch
          %197 = sbr.rel (%p195) target = $region40
        $region39: #{tpu_custom_call.1} parent=35 // pred_region
          %199 = dma.done [#allocation3], 1536
        $region40: #{tpu_custom_call.1} parent=35 // pred_fallthru
          _
        %s200 = smul.u32 2, %s19
        %p201 = scmp.lt.s32.totalorder %s200, 3
        %s202 = scalar_select %p201, %s200, 3
        %s203 = smul.addr %s202, 2
        %s204 = scalar_lea.vmem %s0, %s203
        %p205 = pneg %p40
        %p206 = pneg %p37
        %s207 = smul.u32 2, %s19
        %p208 = scmp.lt.s32.totalorder %s207, 3
        %s209 = scalar_select %p208, %s207, 3
        %s210 = smul.addr %s209, 2
        %s211 = scalar_lea.vmem %s1, %s210
        %p212 = pneg %p66
        %p213 = pneg %p63
        %p214 = pneg %p87
        %p215 = pneg %p84
        %p216 = pneg %p108
        %p217 = pneg %p105
        %p218 = pneg %p134
        %p219 = pneg %p131
        %s220 = sand.u32 %s121, 1
        %s221 = scalar_lea.sflag [#allocation4], %s220
        %s222 = sand.u32 %s121, 1
        %s223 = scalar_lea.vmem [#allocation5], %s222
        %s224 = smul.u32 2, %s19
        %p225 = scmp.lt.s32.totalorder %s224, 3
        %s226 = scalar_select %p225, %s224, 3
        %s227 = smul.addr %s226, 2
        %s228 = scalar_lea.vmem %s0, %s227
        %s229 = smul.u32 2, %s19
        %s230 = smul.u32 2, %s19
        %p231 = scmp.lt.s32.totalorder %s230, 3
        %s232 = scalar_select %p231, %s230, 3
        %s233 = smul.addr %s232, 2
        %s234 = scalar_lea.vmem %s1, %s233
        %s235 = smul.u32 2, %s19
        %v236 = vld [vmem:[%s2] sm:$0xff]
        %v237 = vld [vmem:[%s2 + $0x8] sm:$0xff]
        %v238 = vld [vmem:[%s2 + $0x10] sm:$0xff]
        %v239 = vld [vmem:[%s2 + $0x18] sm:$0xff]
        %v240 = vld [vmem:[#allocation2] sm:$0xff]
        %v241 = vld [vmem:[#allocation2 + $0x8] sm:$0xff]
        %v242 = vld [vmem:[#allocation2 + $0x10] sm:$0xff]
        %v243 = vld [vmem:[#allocation2 + $0x20] sm:$0xff]
        %v244 = vld [vmem:[#allocation2 + $0x28] sm:$0xff]
        %v245 = vld [vmem:[#allocation2 + $0x38] sm:$0xff]
        %v246 = vld [vmem:[#allocation2 + $0x40] sm:$0xff]
        %v247 = vld [vmem:[#allocation2 + $0x50] sm:$0xff]
        %v248 = vld [vmem:[#allocation2 + $0x58] sm:$0xff]
        %v249 = vld [vmem:[%s228] sm:$0x3]
        %v250 = vld [vmem:[%s234] sm:$0x3]
        %v252 = vperm.slane %v249, 0
        %v253 = vperm.slane %v249, 1
        %257 = vset.pattern.permute.xlu0 7
        %258 = vperm.xlu0 %257, %v236
        %v259 = vpop.permute.xlu0 %258
        %262 = vset.pattern.permute.xlu0 7
        %263 = vperm.xlu0 %262, %v237
        %v264 = vpop.permute.xlu0 %263
        %v266 = vmul.f32 %v252, %v259
        %v267 = vmul.f32 %v253, %v259
        %v268 = vmul.f32 %v252, %v264
        %v269 = vmul.f32 %v253, %v264
        %270 = vset.pattern.permute.xlu0 10
        %271 = vperm.xlu0 %270, %v236
        %v272 = vpop.permute.xlu0 %271
        %274 = vset.pattern.permute.xlu0 10
        %275 = vperm.xlu0 %274, %v237
        %v276 = vpop.permute.xlu0 %275
        %v278 = vadd.f32 %v272, %v266
        %v279 = vadd.f32 %v272, %v267
        %v280 = vadd.f32 %v276, %v268
        %v281 = vadd.f32 %v276, %v269
        %v283 = vperm.slane %v250, 0
        %v284 = vperm.slane %v250, 1
        %288 = vset.pattern.permute.xlu0 7
        %289 = vperm.xlu0 %288, %v238
        %v290 = vpop.permute.xlu0 %289
        %293 = vset.pattern.permute.xlu0 7
        %294 = vperm.xlu0 %293, %v239
        %v295 = vpop.permute.xlu0 %294
        %v297 = vmul.f32 %v283, %v290
        %v298 = vmul.f32 %v284, %v290
        %v299 = vmul.f32 %v283, %v295
        %v300 = vmul.f32 %v284, %v295
        %301 = vset.pattern.permute.xlu0 10
        %302 = vperm.xlu0 %301, %v238
        %v303 = vpop.permute.xlu0 %302
        %305 = vset.pattern.permute.xlu0 10
        %306 = vperm.xlu0 %305, %v239
        %v307 = vpop.permute.xlu0 %306
        %v309 = vadd.f32 %v303, %v297
        %v310 = vadd.f32 %v303, %v298
        %v311 = vadd.f32 %v307, %v299
        %v312 = vadd.f32 %v307, %v300
        %313 = vset.pattern.permute.xlu0 8
        %314 = vperm.xlu0 %313, %v236
        %v315 = vpop.permute.xlu0 %314
        %317 = vset.pattern.permute.xlu0 8
        %318 = vperm.xlu0 %317, %v237
        %v319 = vpop.permute.xlu0 %318
        %v321 = vmul.f32 %v252, %v315
        %v322 = vmul.f32 %v253, %v315
        %v323 = vmul.f32 %v252, %v319
        %v324 = vmul.f32 %v253, %v319
        %329 = vrot.lane.b32.xlu0 %v321, 127
        %v330 = vpop.permute.xlu0 %329
        %331 = vrot.lane.b32.xlu0 %v322, 127
        %v332 = vpop.permute.xlu0 %331
        %333 = vrot.lane.b32.xlu0 %v323, 127
        %v334 = vpop.permute.xlu0 %333
        %335 = vrot.lane.b32.xlu0 %v324, 127
        %v336 = vpop.permute.xlu0 %335
        %vm337 = vcmask 1039360
        %v338 = vsel %vm337, %v330, %v332
        %v339 = vsel %vm337, %v334, %v336
        %v344 = vadd.f32 %v278, %v338
        %v345 = vadd.f32 %v279, %v332
        %v346 = vadd.f32 %v280, %v339
        %v347 = vadd.f32 %v281, %v336
        %348 = vset.pattern.permute.xlu0 8
        %349 = vperm.xlu0 %348, %v238
        %v350 = vpop.permute.xlu0 %349
        %352 = vset.pattern.permute.xlu0 8
        %353 = vperm.xlu0 %352, %v239
        %v354 = vpop.permute.xlu0 %353
        %v356 = vmul.f32 %v283, %v350
        %v357 = vmul.f32 %v284, %v350
        %v358 = vmul.f32 %v283, %v354
        %v359 = vmul.f32 %v284, %v354
        %364 = vrot.lane.b32.xlu0 %v356, 127
        %v365 = vpop.permute.xlu0 %364
        %366 = vrot.lane.b32.xlu0 %v357, 127
        %v367 = vpop.permute.xlu0 %366
        %368 = vrot.lane.b32.xlu0 %v358, 127
        %v369 = vpop.permute.xlu0 %368
        %370 = vrot.lane.b32.xlu0 %v359, 127
        %v371 = vpop.permute.xlu0 %370
        %v372 = vsel %vm337, %v365, %v367
        %v373 = vsel %vm337, %v369, %v371
        %v378 = vadd.f32 %v309, %v372
        %v379 = vadd.f32 %v310, %v367
        %v380 = vadd.f32 %v311, %v373
        %v381 = vadd.f32 %v312, %v371
        %382 = vset.pattern.permute.xlu0 9
        %383 = vperm.xlu0 %382, %v236
        %v384 = vpop.permute.xlu0 %383
        %386 = vset.pattern.permute.xlu0 9
        %387 = vperm.xlu0 %386, %v237
        %v388 = vpop.permute.xlu0 %387
        %v390 = vmul.f32 %v252, %v384
        %v391 = vmul.f32 %v253, %v384
        %v392 = vmul.f32 %v252, %v388
        %v393 = vmul.f32 %v253, %v388
        %398 = vrot.lane.b32.xlu0 %v390, 126
        %v399 = vpop.permute.xlu0 %398
        %400 = vrot.lane.b32.xlu0 %v391, 126
        %v401 = vpop.permute.xlu0 %400
        %402 = vrot.lane.b32.xlu0 %v392, 126
        %v403 = vpop.permute.xlu0 %402
        %404 = vrot.lane.b32.xlu0 %v393, 126
        %v405 = vpop.permute.xlu0 %404
        %vm406 = vcmask 1031168
        %v407 = vsel %vm406, %v399, %v401
        %v408 = vsel %vm406, %v403, %v405
        %v413 = vadd.f32 %v344, %v407
        %v414 = vadd.f32 %v345, %v401
        %v415 = vadd.f32 %v346, %v408
        %v416 = vadd.f32 %v347, %v405
        %417 = vset.pattern.permute.xlu0 9
        %418 = vperm.xlu0 %417, %v238
        %v419 = vpop.permute.xlu0 %418
        %421 = vset.pattern.permute.xlu0 9
        %422 = vperm.xlu0 %421, %v239
        %v423 = vpop.permute.xlu0 %422
        %v425 = vmul.f32 %v283, %v419
        %v426 = vmul.f32 %v284, %v419
        %v427 = vmul.f32 %v283, %v423
        %v428 = vmul.f32 %v284, %v423
        %433 = vrot.lane.b32.xlu0 %v425, 126
        %v434 = vpop.permute.xlu0 %433
        %435 = vrot.lane.b32.xlu0 %v426, 126
        %v436 = vpop.permute.xlu0 %435
        %437 = vrot.lane.b32.xlu0 %v427, 126
        %v438 = vpop.permute.xlu0 %437
        %439 = vrot.lane.b32.xlu0 %v428, 126
        %v440 = vpop.permute.xlu0 %439
        %v441 = vsel %vm406, %v434, %v436
        %v442 = vsel %vm406, %v438, %v440
        %v447 = vadd.f32 %v378, %v441
        %v448 = vadd.f32 %v379, %v436
        %v449 = vadd.f32 %v380, %v442
        %v450 = vadd.f32 %v381, %v440
        %v451 = vmax.f32 %v413, 0.0
        %v452 = vmax.f32 %v414, 0.0
        %v453 = vmax.f32 %v415, 0.0
        %v454 = vmax.f32 %v416, 0.0
        %v455 = vmax.f32 %v447, 0.0
        %v456 = vmax.f32 %v448, 0.0
        %v457 = vmax.f32 %v449, 0.0
        %v458 = vmax.f32 %v450, 0.0
        %467 = vrot.lane.b32.xlu0 %v451, 127
        %v468 = vpop.permute.xlu0 %467
        %469 = vrot.lane.b32.xlu0 %v452, 127
        %v470 = vpop.permute.xlu0 %469
        %471 = vrot.lane.b32.xlu0 %v453, 127
        %v472 = vpop.permute.xlu0 %471
        %473 = vrot.lane.b32.xlu0 %v454, 127
        %v474 = vpop.permute.xlu0 %473
        %475 = vrot.lane.b32.xlu0 %v455, 127
        %v476 = vpop.permute.xlu0 %475
        %477 = vrot.lane.b32.xlu0 %v456, 127
        %v478 = vpop.permute.xlu0 %477
        %479 = vrot.lane.b32.xlu0 %v457, 127
        %v480 = vpop.permute.xlu0 %479
        %481 = vrot.lane.b32.xlu0 %v458, 127
        %v482 = vpop.permute.xlu0 %481
        %v483 = vsel %vm337, %v468, %v470
        %v484 = vsel %vm337, %v472, %v474
        %v485 = vsel %vm337, %v476, %v478
        %v486 = vsel %vm337, %v480, %v482
        %491 = vrot.lane.b32.xlu0 %v451, 126
        %v492 = vpop.permute.xlu0 %491
        %493 = vrot.lane.b32.xlu0 %v452, 126
        %v494 = vpop.permute.xlu0 %493
        %495 = vrot.lane.b32.xlu0 %v453, 126
        %v496 = vpop.permute.xlu0 %495
        %497 = vrot.lane.b32.xlu0 %v454, 126
        %v498 = vpop.permute.xlu0 %497
        %499 = vrot.lane.b32.xlu0 %v455, 126
        %v500 = vpop.permute.xlu0 %499
        %501 = vrot.lane.b32.xlu0 %v456, 126
        %v502 = vpop.permute.xlu0 %501
        %503 = vrot.lane.b32.xlu0 %v457, 126
        %v504 = vpop.permute.xlu0 %503
        %505 = vrot.lane.b32.xlu0 %v458, 126
        %v506 = vpop.permute.xlu0 %505
        %v507 = vsel %vm406, %v492, %v494
        %v508 = vsel %vm406, %v496, %v498
        %v509 = vsel %vm406, %v500, %v502
        %v510 = vsel %vm406, %v504, %v506
        %515 = vset.pattern.permute.xlu0 0
        %516 = vperm.xlu0 %515, %v236
        %v517 = vpop.permute.xlu0 %516
        %519 = vset.pattern.permute.xlu0 0
        %520 = vperm.xlu0 %519, %v237
        %v521 = vpop.permute.xlu0 %520
        %523 = vset.pattern.permute.xlu0 0
        %524 = vperm.xlu0 %523, %v238
        %v525 = vpop.permute.xlu0 %524
        %527 = vset.pattern.permute.xlu0 0
        %528 = vperm.xlu0 %527, %v239
        %v529 = vpop.permute.xlu0 %528
        %vm531 = vcmask 785408
        %v533 = vsel %vm531, %v241, 0
        %v536 = vsel %vm531, %v243, 0
        %v539 = vsel %vm531, %v245, 0
        %v542 = vsel %vm531, %v247, 0
        %544 = vmatpush.msra.mxu0 0.0
        %545 = vmatpush.msra.mxu0 0.0
        %546 = vmatpush.msra.mxu0 0.0
        %547 = vmatpush.msra.mxu0 0.0
        %548 = vmatpush.msra.mxu0 %v510
        %549 = vmatpush.msra.mxu0 %v509
        %550 = vmatpush.msra.mxu0 %v508
        %551 = vmatpush.msra.mxu0 %v507
        %552 = vmatpush.msra.mxu0 %v486
        %553 = vmatpush.msra.mxu0 %v485
        %554 = vmatpush.msra.mxu0 %v484
        %555 = vmatpush.msra.mxu0 %v483
        %556 = vmatpush.msra.mxu0 %v457
        %557 = vmatpush.msra.mxu0 %v455
        %558 = vmatpush.msra.mxu0 %v453
        %559 = vmatpush.msra.mxu0 %v451
        %560 = vmatmul.f32.gmra.mxu0 %v533
        %v561 = vpop.f32.mrf.mxu0
        %v562 = vadd.f32 %v517, %v561
        %563 = vmatmul.f32.gmra.mxu0 %v536
        %v564 = vpop.f32.mrf.mxu0
        %v565 = vadd.f32 %v521, %v564
        %566 = vmatmul.f32.gmra.mxu0 %v539
        %v567 = vpop.f32.mrf.mxu0
        %v568 = vadd.f32 %v525, %v567
        %569 = vmatmul.f32.gmra.mxu0 %v542
        %v570 = vpop.f32.mrf.mxu0
        %v571 = vadd.f32 %v529, %v570
        %572 = vdwg.mxu0
        %v573 = vmax.f32 %v562, 0.0
        %v574 = vmax.f32 %v565, 0.0
        %v575 = vmax.f32 %v568, 0.0
        %v576 = vmax.f32 %v571, 0.0
        %v577 = vmul.f32 %v573, %v575
        %v578 = vmul.f32 %v574, %v576
        %579 = vadd.xlane.f32.xlu0 %v577
        %v580 = vpop.xlane.xlu0 %579
        %581 = vadd.xlane.f32.xlu0 %v578
        %v582 = vpop.xlane.xlu0 %581
        %v583 = vperm.slane %v240, 0
        %v584 = vmul.f32 %v573, %v583
        %v585 = vmul.f32 %v574, %v583
        %v586 = vmul.f32 %v575, %v583
        %v587 = vmul.f32 %v576, %v583
        %588 = vadd.xlane.f32.xlu0 %v584
        %v589 = vpop.xlane.xlu0 %588
        %590 = vadd.xlane.f32.xlu0 %v585
        %v591 = vpop.xlane.xlu0 %590
        %592 = vadd.xlane.f32.xlu0 %v586
        %v593 = vpop.xlane.xlu0 %592
        %594 = vadd.xlane.f32.xlu0 %v587
        %v595 = vpop.xlane.xlu0 %594
        %v596 = vperm.slane %v236, 0
        %v597 = vadd.f32 %v589, %v596
        %v598 = vadd.f32 %v591, %v596
        %v599 = vadd.f32 %v593, %v596
        %v600 = vadd.f32 %v595, %v596
        %s601 = scalar_lea.vmem %s228, 2
        %v602 = vld [vmem:[%s601] sm:$0x3]
        %s603 = scalar_lea.vmem %s234, 2
        %v604 = vld [vmem:[%s603] sm:$0x3]
        %v606 = vperm.slane %v602, 0
        %v607 = vperm.slane %v602, 1
        %v610 = vmul.f32 %v606, %v259
        %v611 = vmul.f32 %v607, %v259
        %v612 = vmul.f32 %v606, %v264
        %v613 = vmul.f32 %v607, %v264
        %v614 = vadd.f32 %v272, %v610
        %v615 = vadd.f32 %v272, %v611
        %v616 = vadd.f32 %v276, %v612
        %v617 = vadd.f32 %v276, %v613
        %v619 = vperm.slane %v604, 0
        %v620 = vperm.slane %v604, 1
        %v623 = vmul.f32 %v619, %v290
        %v624 = vmul.f32 %v620, %v290
        %v625 = vmul.f32 %v619, %v295
        %v626 = vmul.f32 %v620, %v295
        %v627 = vadd.f32 %v303, %v623
        %v628 = vadd.f32 %v303, %v624
        %v629 = vadd.f32 %v307, %v625
        %v630 = vadd.f32 %v307, %v626
        %v631 = vmul.f32 %v606, %v315
        %v632 = vmul.f32 %v607, %v315
        %v633 = vmul.f32 %v606, %v319
        %v634 = vmul.f32 %v607, %v319
        %639 = vrot.lane.b32.xlu0 %v631, 127
        %v640 = vpop.permute.xlu0 %639
        %641 = vrot.lane.b32.xlu0 %v632, 127
        %v642 = vpop.permute.xlu0 %641
        %643 = vrot.lane.b32.xlu0 %v633, 127
        %v644 = vpop.permute.xlu0 %643
        %645 = vrot.lane.b32.xlu0 %v634, 127
        %v646 = vpop.permute.xlu0 %645
        %v647 = vsel %vm337, %v640, %v642
        %v648 = vsel %vm337, %v644, %v646
        %v653 = vadd.f32 %v614, %v647
        %v654 = vadd.f32 %v615, %v642
        %v655 = vadd.f32 %v616, %v648
        %v656 = vadd.f32 %v617, %v646
        %v657 = vmul.f32 %v619, %v350
        %v658 = vmul.f32 %v620, %v350
        %v659 = vmul.f32 %v619, %v354
        %v660 = vmul.f32 %v620, %v354
        %665 = vrot.lane.b32.xlu0 %v657, 127
        %v666 = vpop.permute.xlu0 %665
        %667 = vrot.lane.b32.xlu0 %v658, 127
        %v668 = vpop.permute.xlu0 %667
        %669 = vrot.lane.b32.xlu0 %v659, 127
        %v670 = vpop.permute.xlu0 %669
        %671 = vrot.lane.b32.xlu0 %v660, 127
        %v672 = vpop.permute.xlu0 %671
        %v673 = vsel %vm337, %v666, %v668
        %v674 = vsel %vm337, %v670, %v672
        %v679 = vadd.f32 %v627, %v673
        %v680 = vadd.f32 %v628, %v668
        %v681 = vadd.f32 %v629, %v674
        %v682 = vadd.f32 %v630, %v672
        %v683 = vmul.f32 %v606, %v384
        %v684 = vmul.f32 %v607, %v384
        %v685 = vmul.f32 %v606, %v388
        %v686 = vmul.f32 %v607, %v388
        %691 = vrot.lane.b32.xlu0 %v683, 126
        %v692 = vpop.permute.xlu0 %691
        %693 = vrot.lane.b32.xlu0 %v684, 126
        %v694 = vpop.permute.xlu0 %693
        %695 = vrot.lane.b32.xlu0 %v685, 126
        %v696 = vpop.permute.xlu0 %695
        %697 = vrot.lane.b32.xlu0 %v686, 126
        %v698 = vpop.permute.xlu0 %697
        %v699 = vsel %vm406, %v692, %v694
        %v700 = vsel %vm406, %v696, %v698
        %v705 = vadd.f32 %v653, %v699
        %v706 = vadd.f32 %v654, %v694
        %v707 = vadd.f32 %v655, %v700
        %v708 = vadd.f32 %v656, %v698
        %v709 = vmul.f32 %v619, %v419
        %v710 = vmul.f32 %v620, %v419
        %v711 = vmul.f32 %v619, %v423
        %v712 = vmul.f32 %v620, %v423
        %717 = vrot.lane.b32.xlu0 %v709, 126
        %v718 = vpop.permute.xlu0 %717
        %719 = vrot.lane.b32.xlu0 %v710, 126
        %v720 = vpop.permute.xlu0 %719
        %721 = vrot.lane.b32.xlu0 %v711, 126
        %v722 = vpop.permute.xlu0 %721
        %723 = vrot.lane.b32.xlu0 %v712, 126
        %v724 = vpop.permute.xlu0 %723
        %v725 = vsel %vm406, %v718, %v720
        %v726 = vsel %vm406, %v722, %v724
        %v731 = vadd.f32 %v679, %v725
        %v732 = vadd.f32 %v680, %v720
        %v733 = vadd.f32 %v681, %v726
        %v734 = vadd.f32 %v682, %v724
        %v735 = vmax.f32 %v705, 0.0
        %v736 = vmax.f32 %v706, 0.0
        %v737 = vmax.f32 %v707, 0.0
        %v738 = vmax.f32 %v708, 0.0
        %v739 = vmax.f32 %v731, 0.0
        %v740 = vmax.f32 %v732, 0.0
        %v741 = vmax.f32 %v733, 0.0
        %v742 = vmax.f32 %v734, 0.0
        %751 = vrot.lane.b32.xlu0 %v735, 127
        %v752 = vpop.permute.xlu0 %751
        %753 = vrot.lane.b32.xlu0 %v736, 127
        %v754 = vpop.permute.xlu0 %753
        %755 = vrot.lane.b32.xlu0 %v737, 127
        %v756 = vpop.permute.xlu0 %755
        %757 = vrot.lane.b32.xlu0 %v738, 127
        %v758 = vpop.permute.xlu0 %757
        %759 = vrot.lane.b32.xlu0 %v739, 127
        %v760 = vpop.permute.xlu0 %759
        %761 = vrot.lane.b32.xlu0 %v740, 127
        %v762 = vpop.permute.xlu0 %761
        %763 = vrot.lane.b32.xlu0 %v741, 127
        %v764 = vpop.permute.xlu0 %763
        %765 = vrot.lane.b32.xlu0 %v742, 127
        %v766 = vpop.permute.xlu0 %765
        %v767 = vsel %vm337, %v752, %v754
        %v768 = vsel %vm337, %v756, %v758
        %v769 = vsel %vm337, %v760, %v762
        %v770 = vsel %vm337, %v764, %v766
        %775 = vrot.lane.b32.xlu0 %v735, 126
        %v776 = vpop.permute.xlu0 %775
        %777 = vrot.lane.b32.xlu0 %v736, 126
        %v778 = vpop.permute.xlu0 %777
        %779 = vrot.lane.b32.xlu0 %v737, 126
        %v780 = vpop.permute.xlu0 %779
        %781 = vrot.lane.b32.xlu0 %v738, 126
        %v782 = vpop.permute.xlu0 %781
        %783 = vrot.lane.b32.xlu0 %v739, 126
        %v784 = vpop.permute.xlu0 %783
        %785 = vrot.lane.b32.xlu0 %v740, 126
        %v786 = vpop.permute.xlu0 %785
        %787 = vrot.lane.b32.xlu0 %v741, 126
        %v788 = vpop.permute.xlu0 %787
        %789 = vrot.lane.b32.xlu0 %v742, 126
        %v790 = vpop.permute.xlu0 %789
        %v791 = vsel %vm406, %v776, %v778
        %v792 = vsel %vm406, %v780, %v782
        %v793 = vsel %vm406, %v784, %v786
        %v794 = vsel %vm406, %v788, %v790
        %799 = vmatpush.msra.mxu0 0.0
        %800 = vmatpush.msra.mxu0 0.0
        %801 = vmatpush.msra.mxu0 0.0
        %802 = vmatpush.msra.mxu0 0.0
        %803 = vmatpush.msra.mxu0 %v794
        %804 = vmatpush.msra.mxu0 %v793
        %805 = vmatpush.msra.mxu0 %v792
        %806 = vmatpush.msra.mxu0 %v791
        %807 = vmatpush.msra.mxu0 %v770
        %808 = vmatpush.msra.mxu0 %v769
        %809 = vmatpush.msra.mxu0 %v768
        %810 = vmatpush.msra.mxu0 %v767
        %811 = vmatpush.msra.mxu0 %v741
        %812 = vmatpush.msra.mxu0 %v739
        %813 = vmatpush.msra.mxu0 %v737
        %814 = vmatpush.msra.mxu0 %v735
        %815 = vmatmul.f32.gmra.mxu0 %v533
        %v816 = vpop.f32.mrf.mxu0
        %v817 = vadd.f32 %v517, %v816
        %818 = vmatmul.f32.gmra.mxu0 %v536
        %v819 = vpop.f32.mrf.mxu0
        %v820 = vadd.f32 %v521, %v819
        %821 = vmatmul.f32.gmra.mxu0 %v539
        %v822 = vpop.f32.mrf.mxu0
        %v823 = vadd.f32 %v525, %v822
        %824 = vmatmul.f32.gmra.mxu0 %v542
        %v825 = vpop.f32.mrf.mxu0
        %v826 = vadd.f32 %v529, %v825
        %827 = vdwg.mxu0
        %v828 = vmax.f32 %v817, 0.0
        %v829 = vmax.f32 %v820, 0.0
        %v830 = vmax.f32 %v823, 0.0
        %v831 = vmax.f32 %v826, 0.0
        %v832 = vmul.f32 %v828, %v830
        %v833 = vmul.f32 %v829, %v831
        %834 = vadd.xlane.f32.xlu0 %v832
        %v835 = vpop.xlane.xlu0 %834
        %836 = vadd.xlane.f32.xlu0 %v833
        %v837 = vpop.xlane.xlu0 %836
        %v838 = vmul.f32 %v828, %v583
        %v839 = vmul.f32 %v829, %v583
        %v840 = vmul.f32 %v830, %v583
        %v841 = vmul.f32 %v831, %v583
        %842 = vadd.xlane.f32.xlu0 %v838
        %v843 = vpop.xlane.xlu0 %842
        %844 = vadd.xlane.f32.xlu0 %v839
        %v845 = vpop.xlane.xlu0 %844
        %846 = vadd.xlane.f32.xlu0 %v840
        %v847 = vpop.xlane.xlu0 %846
        %848 = vadd.xlane.f32.xlu0 %v841
        %v849 = vpop.xlane.xlu0 %848
        %v850 = vadd.f32 %v843, %v596
        %v851 = vadd.f32 %v845, %v596
        %v852 = vadd.f32 %v847, %v596
        %v853 = vadd.f32 %v849, %v596
        %vm854 = vcmask 7168
        %v855 = vsel %vm854, %v580, %v835
        %v856 = vsel %vm854, %v582, %v837
        %861 = vrot.lane.b32.xlu0 %v597, 122
        %v862 = vpop.permute.xlu0 %861
        %863 = vrot.lane.b32.xlu0 %v598, 122
        %v864 = vpop.permute.xlu0 %863
        %865 = vrot.lane.b32.xlu0 %v599, 122
        %v866 = vpop.permute.xlu0 %865
        %867 = vrot.lane.b32.xlu0 %v600, 122
        %v868 = vpop.permute.xlu0 %867
        %877 = vrot.lane.b32.xlu0 %v850, 123
        %v878 = vpop.permute.xlu0 %877
        %879 = vrot.lane.b32.xlu0 %v851, 123
        %v880 = vpop.permute.xlu0 %879
        %881 = vrot.lane.b32.xlu0 %v852, 123
        %v882 = vpop.permute.xlu0 %881
        %883 = vrot.lane.b32.xlu0 %v853, 123
        %v884 = vpop.permute.xlu0 %883
        %v889 = vsel %vm854, %v862, %v878
        %v890 = vsel %vm854, %v864, %v880
        %v891 = vsel %vm854, %v866, %v882
        %v892 = vsel %vm854, %v868, %v884
        %vm893 = vcmask 15360
        %v894 = vsel %vm893, %v855, 0.0
        %v895 = vsel %vm893, %v856, 0.0
        %v896 = vadd.f32 %v894, %v895
        %v897 = vrot.slane %v896, 4
        %v898 = vadd.f32 %v896, %v897
        %v899 = vrot.slane %v898, 2
        %v900 = vadd.f32 %v898, %v899
        %v901 = vrot.slane %v900, 1
        %v902 = vadd.f32 %v900, %v901
        %v903 = vrcp.pop 16.0
        %v904 = vmul.f32 16.0, %v903
        %v905 = vsub.f32 1.0, %v904
        %v906 = vmul.f32 %v903, %v905
        %v907 = vadd.f32 %v903, %v906
        %vm908 = vweird.f32 %v903
        %v909 = vsel %vm908, %v903, %v907
        %v910 = vmul.f32 %v902, %v909
        %v911 = vsub.f32 %v855, %v910
        %v912 = vsub.f32 %v856, %v910
        %v913 = vmul.f32 %v911, %v911
        %v914 = vmul.f32 %v912, %v912
        %v915 = vsel %vm893, %v913, 0.0
        %v916 = vsel %vm893, %v914, 0.0
        %v917 = vadd.f32 %v915, %v916
        %v918 = vrot.slane %v917, 4
        %v919 = vadd.f32 %v917, %v918
        %v920 = vrot.slane %v919, 2
        %v921 = vadd.f32 %v919, %v920
        %v922 = vrot.slane %v921, 1
        %v923 = vadd.f32 %v921, %v922
        %v924 = vmul.f32 %v923, %v909
        %v925 = vadd.f32 %v924, 1e-05
        %v926 = vrsqrt.pop %v925
        %v927 = vmul.f32 %v926, %v925
        %v928 = vmul.f32 %v927, %v926
        %v929 = vmul.f32 0.5, %v928
        %v930 = vsub.f32 1.5, %v929
        %v931 = vmul.f32 %v926, %v930
        %vm932 = vweird.f32 %v925
        %vm933 = vweird.f32 %v926
        %vm934 = vmor %vm932, %vm933
        %v935 = vsel %vm934, %v926, %v931
        %v936 = vmul.f32 %v911, %v935
        %v937 = vmul.f32 %v912, %v935
        %938 = vset.pattern.permute.xlu0 1
        %939 = vperm.xlu0 %938, %v236
        %v940 = vpop.permute.xlu0 %939
        %942 = vset.pattern.permute.xlu0 1
        %943 = vperm.xlu0 %942, %v237
        %v944 = vpop.permute.xlu0 %943
        %v946 = vmul.f32 %v936, %v940
        %v947 = vmul.f32 %v937, %v944
        %948 = vset.pattern.permute.xlu0 2
        %949 = vperm.xlu0 %948, %v236
        %v950 = vpop.permute.xlu0 %949
        %952 = vset.pattern.permute.xlu0 2
        %953 = vperm.xlu0 %952, %v237
        %v954 = vpop.permute.xlu0 %953
        %v956 = vadd.f32 %v946, %v950
        %v957 = vadd.f32 %v947, %v954
        %958 = vset.pattern.permute.xlu0 3
        %959 = vperm.xlu0 %958, %v236
        %v960 = vpop.permute.xlu0 %959
        %962 = vset.pattern.permute.xlu0 3
        %963 = vperm.xlu0 %962, %v237
        %v964 = vpop.permute.xlu0 %963
        %966 = vset.pattern.permute.xlu0 3
        %967 = vperm.xlu0 %966, %v238
        %v968 = vpop.permute.xlu0 %967
        %970 = vset.pattern.permute.xlu0 3
        %971 = vperm.xlu0 %970, %v239
        %v972 = vpop.permute.xlu0 %971
        %974 = vrot.lane.b32.xlu0 %v241, 32
        %v975 = vpop.permute.xlu0 %974
        %976 = vrot.lane.b32.xlu0 %v243, 32
        %v977 = vpop.permute.xlu0 %976
        %978 = vrot.lane.b32.xlu0 %v245, 32
        %v979 = vpop.permute.xlu0 %978
        %980 = vrot.lane.b32.xlu0 %v247, 32
        %v981 = vpop.permute.xlu0 %980
        %vm982 = vcmask 261120
        %v983 = vsel %vm982, %v975, 0
        %v985 = vsel %vm982, %v977, 0
        %v987 = vsel %vm982, %v979, 0
        %v989 = vsel %vm982, %v981, 0
        %991 = vmatpush.msra.mxu0 0.0
        %992 = vmatpush.msra.mxu0 0.0
        %993 = vmatpush.msra.mxu0 0.0
        %994 = vmatpush.msra.mxu0 0.0
        %995 = vmatpush.msra.mxu0 0.0
        %996 = vmatpush.msra.mxu0 0.0
        %997 = vmatpush.msra.mxu0 0.0
        %998 = vmatpush.msra.mxu0 0.0
        %999 = vmatpush.msra.mxu0 0.0
        %1000 = vmatpush.msra.mxu0 0.0
        %1001 = vmatpush.msra.mxu0 0.0
        %1002 = vmatpush.msra.mxu0 0.0
        %1003 = vmatpush.msra.mxu0 %v892
        %1004 = vmatpush.msra.mxu0 %v891
        %1005 = vmatpush.msra.mxu0 %v890
        %1006 = vmatpush.msra.mxu0 %v889
        %1007 = vmatmul.f32.gmra.mxu0 %v983
        %v1008 = vpop.f32.mrf.mxu0
        %v1009 = vadd.f32 %v960, %v1008
        %1010 = vmatmul.f32.gmra.mxu0 %v985
        %v1011 = vpop.f32.mrf.mxu0
        %v1012 = vadd.f32 %v964, %v1011
        %1013 = vmatmul.f32.gmra.mxu0 %v987
        %v1014 = vpop.f32.mrf.mxu0
        %v1015 = vadd.f32 %v968, %v1014
        %1016 = vmatmul.f32.gmra.mxu0 %v989
        %v1017 = vpop.f32.mrf.mxu0
        %v1018 = vadd.f32 %v972, %v1017
        %1019 = vdwg.mxu0
        %1024 = vrot.lane.b32.xlu0 %v242, 112
        %v1025 = vpop.permute.xlu0 %1024
        %1026 = vrot.lane.b32.xlu0 %v244, 112
        %v1027 = vpop.permute.xlu0 %1026
        %1028 = vrot.lane.b32.xlu0 %v246, 112
        %v1029 = vpop.permute.xlu0 %1028
        %1030 = vrot.lane.b32.xlu0 %v248, 112
        %v1031 = vpop.permute.xlu0 %1030
        %v1032 = vsel %vm982, %v1025, 0
        %v1034 = vsel %vm982, %v1027, 0
        %v1036 = vsel %vm982, %v1029, 0
        %v1038 = vsel %vm982, %v1031, 0
        %1040 = vmatpush.msra.mxu0 0.0
        %1041 = vmatpush.msra.mxu0 0.0
        %1042 = vmatpush.msra.mxu0 0.0
        %1043 = vmatpush.msra.mxu0 0.0
        %1044 = vmatpush.msra.mxu0 0.0
        %1045 = vmatpush.msra.mxu0 0.0
        %1046 = vmatpush.msra.mxu0 0.0
        %1047 = vmatpush.msra.mxu0 0.0
        %1048 = vmatpush.msra.mxu0 0.0
        %1049 = vmatpush.msra.mxu0 0.0
        %1050 = vmatpush.msra.mxu0 0.0
        %1051 = vmatpush.msra.mxu0 0.0
        %1052 = vmatpush.msra.mxu0 %v1018
        %1053 = vmatpush.msra.mxu0 %v1015
        %1054 = vmatpush.msra.mxu0 %v1012
        %1055 = vmatpush.msra.mxu0 %v1009
        %1056 = vmatmul.f32.gmra.mxu0 %v1032
        %v1057 = vpop.f32.mrf.mxu0
        %v1058 = vadd.f32 0.0, %v1057
        %1059 = vmatmul.f32.gmra.mxu0 %v1034
        %v1060 = vpop.f32.mrf.mxu0
        %v1061 = vadd.f32 0.0, %v1060
        %1062 = vmatmul.f32.gmra.mxu0 %v1036
        %v1063 = vpop.f32.mrf.mxu0
        %v1064 = vadd.f32 0.0, %v1063
        %1065 = vmatmul.f32.gmra.mxu0 %v1038
        %v1066 = vpop.f32.mrf.mxu0
        %v1067 = vadd.f32 0.0, %v1066
        %1068 = vdwg.mxu0
        %vm1069 = vcmask 130048
        %v1070 = vsel %vm1069, %v242, 0
        %v1072 = vsel %vm1069, %v244, 0
        %v1074 = vsel %vm1069, %v246, 0
        %v1076 = vsel %vm1069, %v248, 0
        %1078 = vmatpush.msra.mxu0 0.0
        %1079 = vmatpush.msra.mxu0 0.0
        %1080 = vmatpush.msra.mxu0 0.0
        %1081 = vmatpush.msra.mxu0 0.0
        %1082 = vmatpush.msra.mxu0 0.0
        %1083 = vmatpush.msra.mxu0 0.0
        %1084 = vmatpush.msra.mxu0 0.0
        %1085 = vmatpush.msra.mxu0 0.0
        %1086 = vmatpush.msra.mxu0 0.0
        %1087 = vmatpush.msra.mxu0 0.0
        %1088 = vmatpush.msra.mxu0 0.0
        %1089 = vmatpush.msra.mxu0 0.0
        %1090 = vmatpush.msra.mxu0 0.0
        %1091 = vmatpush.msra.mxu0 0.0
        %1092 = vmatpush.msra.mxu0 %v957
        %1093 = vmatpush.msra.mxu0 %v956
        %1094 = vmatmul.f32.gmra.mxu0 %v1070
        %v1095 = vpop.f32.mrf.mxu0
        %v1096 = vadd.f32 %v1058, %v1095
        %1097 = vmatmul.f32.gmra.mxu0 %v1072
        %v1098 = vpop.f32.mrf.mxu0
        %v1099 = vadd.f32 %v1061, %v1098
        %1100 = vmatmul.f32.gmra.mxu0 %v1074
        %v1101 = vpop.f32.mrf.mxu0
        %v1102 = vadd.f32 %v1064, %v1101
        %1103 = vmatmul.f32.gmra.mxu0 %v1076
        %v1104 = vpop.f32.mrf.mxu0
        %v1105 = vadd.f32 %v1067, %v1104
        %1106 = vdwg.mxu0
        %1107 = vset.pattern.permute.xlu0 4
        %1108 = vperm.xlu0 %1107, %v236
        %v1109 = vpop.permute.xlu0 %1108
        %1111 = vset.pattern.permute.xlu0 4
        %1112 = vperm.xlu0 %1111, %v237
        %v1113 = vpop.permute.xlu0 %1112
        %1115 = vset.pattern.permute.xlu0 4
        %1116 = vperm.xlu0 %1115, %v238
        %v1117 = vpop.permute.xlu0 %1116
        %1119 = vset.pattern.permute.xlu0 4
        %1120 = vperm.xlu0 %1119, %v239
        %v1121 = vpop.permute.xlu0 %1120
        %v1123 = vadd.f32 %v1096, %v1109
        %v1124 = vadd.f32 %v1099, %v1113
        %v1125 = vadd.f32 %v1102, %v1117
        %v1126 = vadd.f32 %v1105, %v1121
        %v1127 = vmax.f32 %v1123, 0.0
        %v1128 = vmax.f32 %v1124, 0.0
        %v1129 = vmax.f32 %v1125, 0.0
        %v1130 = vmax.f32 %v1126, 0.0
        %1131 = vset.pattern.permute.xlu0 5
        %1132 = vperm.xlu0 %1131, %v236
        %v1133 = vpop.permute.xlu0 %1132
        %1135 = vset.pattern.permute.xlu0 5
        %1136 = vperm.xlu0 %1135, %v237
        %v1137 = vpop.permute.xlu0 %1136
        %1139 = vset.pattern.permute.xlu0 5
        %1140 = vperm.xlu0 %1139, %v238
        %v1141 = vpop.permute.xlu0 %1140
        %1143 = vset.pattern.permute.xlu0 5
        %1144 = vperm.xlu0 %1143, %v239
        %v1145 = vpop.permute.xlu0 %1144
        %v1147 = vmul.f32 %v1127, %v1133
        %v1148 = vmul.f32 %v1128, %v1137
        %v1149 = vmul.f32 %v1129, %v1141
        %v1150 = vmul.f32 %v1130, %v1145
        %v1151 = vsel %vm893, %v1147, 0.0
        %v1152 = vsel %vm893, %v1148, 0.0
        %v1153 = vadd.f32 %v1151, %v1152
        %v1154 = vsel %vm893, %v1149, 0.0
        %v1155 = vadd.f32 %v1153, %v1154
        %v1156 = vsel %vm893, %v1150, 0.0
        %v1157 = vadd.f32 %v1155, %v1156
        %v1158 = vrot.slane %v1157, 4
        %v1159 = vadd.f32 %v1157, %v1158
        %v1160 = vrot.slane %v1159, 2
        %v1161 = vadd.f32 %v1159, %v1160
        %v1162 = vrot.slane %v1161, 1
        %v1163 = vadd.f32 %v1161, %v1162
        %1164 = vset.pattern.permute.xlu0 6
        %1165 = vperm.xlu0 %1164, %v236
        %v1166 = vpop.permute.xlu0 %1165
        %v1168 = vadd.f32 %v1163, %v1166
        %v1169 = vmul.f32 %v1168, 50.0
        %v1170 = vmax.f32 %v1169, -50.0
        %v1171 = vmin.f32 %v1170, 50.0
        %v1172 = vcvt.f32.s32.ties.to.even %v1171
        %vm1173 = vcmask 9217
        %1174 = vst.msk [vmem:[%s223 - $0x1] sm:$0x2] %vm1173, %v1172
        %s1175 = sand.u32 %s121, 1
        %s1176 = scalar_lea.sflag [#allocation4], %s1175
        %s1177 = sand.u32 %s121, 1
        %s1178 = scalar_lea.vmem [#allocation5], %s1177
        // Predicated region
        $region41: #{tpu_custom_call.1} parent=35 // pred_check
          %p1179 = pneg %p131
        $region42: #{tpu_custom_call.1} parent=35 // pred_check_branch
          %1181 = sbr.rel (%p1179) target = $region44
        $region43: #{tpu_custom_call.1} parent=35 // pred_region
          %1183 = vsyncadd %s1176, 0
          %s1184 = scalar_lea.hbm %s4, %s19
          %s1186 = sshll.u32 %s1178, 4
          %s1187 = int_to_ptr.vmem [resolvable:$true] %s1186
          %s1188 = sshll.u32 %s1184, 4
          %s1189 = int_to_ptr.hbm [resolvable:$true] %s1188
          %1191 = dma.vmem_to_hbm [thread:$0]  %s1187, 16, %s1189, %s1176
        $region44: #{tpu_custom_call.1} parent=35 // pred_fallthru
          _
      $region36: #{tpu_custom_call.1} parent=5 // pred_fallthru
        _
      %p1192 = scmp.le.s32.totalorder 2, %s14
      // Predicated region
      $region45: #{tpu_custom_call.1} parent=5 // pred_check
        %p1193 = pneg %p1192
      $region46: #{tpu_custom_call.1} parent=5 // pred_check_branch
        %1195 = sbr.rel (%p1193) target = $region48
      $region47: #{tpu_custom_call.1} parent=5 // pred_region
        %s1196 = ssub.s32 %s14, 2
        // Predicated region
        $region49: #{tpu_custom_call.1} parent=47 // pred_check
          %p1197 = pneg %p137
        $region50: #{tpu_custom_call.1} parent=47 // pred_check_branch
          %1199 = sbr.rel (%p1197) target = $region52
        $region51: #{tpu_custom_call.1} parent=47 // pred_region
          %s1200 = sand.u32 %s122, 1
          %s1201 = scalar_lea.sflag [#allocation4], %s1200
          %s1202 = sand.u32 %s122, 1
          %s1203 = scalar_lea.vmem [#allocation5], %s1202
          %1205 = dma.done %s1201, 16
        $region52: #{tpu_custom_call.1} parent=47 // pred_fallthru
          _
      $region48: #{tpu_custom_call.1} parent=5 // pred_fallthru
        _
    $region6: #{tpu_custom_call.1} parent=1 // loop_footer
      %s18 = sadd.s32 1, %s14
    $region7: #{tpu_custom_call.1} parent=1 // loop_footer_branch
      %13 = sbr.rel target = $region3
    $region8: #{tpu_custom_call.1} parent=1 // loop_exit
      _
    %1206 = vsyncpa [#allocation3], 1
    %s1207 = scalar_lea.sflag [#allocation3], 1
    %1208 = vsyncpa %s1207, 1
    %1209 = vsyncpa [#allocation4], 1
    %s1210 = scalar_lea.sflag [#allocation4], 1
    %1211 = vsyncpa %s1210, 1

</llo_original>
